<compile_context>
chip_gen: v5e
topology: v5e:2x2
jax: 0.10.0
libtpu: 0.0.40
codegen_flags: <defaults>
</compile_context>

<pallas_src>
import functools
import math

import jax
import jax.numpy as jnp
from jax import lax
from jax.experimental import pallas as pl
from jax.experimental.pallas import tpu as pltpu


# ----------------------------------------------------------------------------
# Fused decoder-block kernel (one grid step = one (batch, layer) pair)
# ----------------------------------------------------------------------------

def decoder_block_kernel(x_ref, enc_ref, tb_ref, sb_ref,
                         wqkv_ref, wo_ref, wff1_ref, bff1_ref, wff2_ref,
                         vec_ref, out_ref, *, heads, d_k):
    """One DecoderBlock for one batch element.

    x_ref   : (1, T,  D)   embedded + positional-encoded input (used at l==0)
    enc_ref : (1, Te, D)   encoder output
    tb_ref  : (T, T)       additive causal bias (0 / -1e30)
    sb_ref  : (T, Te)      additive source bias (0 / -1e30)
    wqkv_ref: (1, D, 3D)   [Wq | Wk | Wv]; 1/sqrt(d_k) folded into Wq columns
    wo_ref  : (1, D, D)    fc_out weight (x @ W layout)
    wff1_ref: (1, D, 4D)   bff1_ref: (1, 1, 4D)
    wff2_ref: (1, 4D, D)
    vec_ref : (1, 8, D)    rows = [g1, b1, g2, b2, g3, b3, bo, bff2]
    out_ref : (1, T,  D)   carried activation (resident across the layer axis)
    """
    D = heads * d_k
    l = pl.program_id(1)

    # Layer 0: seed the carried activation from the embedded input.  For l > 0
    # the output block (same block index across the layer axis) still holds the
    # previous layer's result.
    @pl.when(l == 0)
    def _():
        out_ref[0] = x_ref[0]

    x = out_ref[0]                     # (T, D)  carried activation
    enc = enc_ref[0]                   # (Te, D)
    wqkv = wqkv_ref[0]                 # (D, 3D)
    wo = wo_ref[0]                     # (D, D)
    vec = vec_ref[0]                   # (8, D)
    g1, b1 = vec[0:1], vec[1:2]
    g2, b2 = vec[2:3], vec[3:4]
    g3, b3 = vec[4:5], vec[5:6]
    bo = vec[6:7]                      # (1, D) fc_out bias
    bff2 = vec[7:8]                    # (1, D) second FF bias

    def softmax_rows(s):               # s: (Tq, Tk), f32
        m = jnp.max(s, axis=-1, keepdims=True)
        e = jnp.exp(s - m)
        return e * pl.reciprocal(jnp.sum(e, axis=-1, keepdims=True), approx=True)

    def mha(q_src, kv_src, bias, self_attn):
        """Multi-head attention + fc_out (weights shared self/cross per spec)."""
        if self_attn:                  # single fused QKV matmul
            qkv = jnp.dot(q_src, wqkv, preferred_element_type=jnp.float32)
            q_all, k_all, v_all = qkv[:, :D], qkv[:, D:2 * D], qkv[:, 2 * D:]
        else:                          # Q from q_src, K/V from kv_src
            q_all = jnp.dot(q_src, wqkv[:, :D], preferred_element_type=jnp.float32)
            kv = jnp.dot(kv_src, wqkv[:, D:], preferred_element_type=jnp.float32)
            k_all, v_all = kv[:, :D], kv[:, D:]

        acc = jnp.zeros((q_src.shape[0], D), jnp.float32)
        for h in range(heads):         # static unroll (heads is small)
            sl = slice(h * d_k, (h + 1) * d_k)
            qh, kh, vh = q_all[:, sl], k_all[:, sl], v_all[:, sl]
            # scores: contract last dims of both (no materialized k.T)
            s = lax.dot_general(qh, kh, (((1,), (1,)), ((), ())),
                                preferred_element_type=jnp.float32)
            p = softmax_rows(s + bias)
            ctx = jnp.dot(p, vh, preferred_element_type=jnp.float32)    # (Tq, d_k)
            # fc_out without concat: concat(ctx_h) @ Wo == sum_h ctx_h @ Wo[rows_h]
            acc = acc + jnp.dot(ctx, wo[sl, :], preferred_element_type=jnp.float32)
        return acc + bo

    def add_ln(a, b, gamma, beta):     # LayerNorm(a + b), eps=1e-5, biased var
        y = a + b
        mu = jnp.mean(y, axis=-1, keepdims=True)
        var = jnp.mean(jnp.square(y - mu), axis=-1, keepdims=True)
        return (y - mu) * lax.rsqrt(var + 1e-5) * gamma + beta

    # --- self attention (mask=trg) -> norm1 --------------------------------
    a1 = mha(x, x, tb_ref[...], self_attn=True)
    out1 = add_ln(a1, x, g1, b1)

    # --- cross attention (same weights, per the source; mask=src) -> norm2 --
    a2 = mha(out1, enc, sb_ref[...], self_attn=False)
    out2 = add_ln(out1, a2, g2, b2)

    # --- feed forward -> norm3 ----------------------------------------------
    h1 = jnp.maximum(
        jnp.dot(out2, wff1_ref[0], preferred_element_type=jnp.float32) + bff1_ref[0],
        0.0)
    ff = jnp.dot(h1, wff2_ref[0], preferred_element_type=jnp.float32) + bff2
    out3 = add_ln(out2, ff, g3, b3)

    # TODO(synk): nn.Dropout omitted (identity at inference time).
    out_ref[0] = out3.astype(out_ref.dtype)


# ----------------------------------------------------------------------------
# pallas_call wrapper: whole decoder stack in one call
# ----------------------------------------------------------------------------

def run_decoder(x, x_enc, trg_bias, src_bias, params, *, heads):
    B, T, D = x.shape
    Te = x_enc.shape[1]
    L = params["wqkv"].shape[0]
    d_k = D // heads

    kern = functools.partial(decoder_block_kernel, heads=heads, d_k=d_k)
    per_b = lambda b, l: (b, 0, 0)     # per-batch activations (resident across l)
    per_l = lambda b, l: (l, 0, 0)     # per-layer weights
    mask2d = lambda b, l: (0, 0)       # shared masks (resident)

    return pl.pallas_call(
        kern,
        out_shape=jax.ShapeDtypeStruct((B, T, D), jnp.float32),
        grid=(B, L),
        in_specs=[
            pl.BlockSpec((1, T, D), per_b),           # embedded + PE input
            pl.BlockSpec((1, Te, D), per_b),          # encoder output
            pl.BlockSpec((T, T), mask2d),             # trg additive bias
            pl.BlockSpec((T, Te), mask2d),            # src additive bias
            pl.BlockSpec((1, D, 3 * D), per_l),       # Wqkv (scale folded into Q)
            pl.BlockSpec((1, D, D), per_l),           # Wo
            pl.BlockSpec((1, D, 4 * D), per_l),       # Wff1
            pl.BlockSpec((1, 1, 4 * D), per_l),       # bff1
            pl.BlockSpec((1, 4 * D, D), per_l),       # Wff2
            pl.BlockSpec((1, 8, D), per_l),           # packed LN g/b, bo, bff2
        ],
        out_specs=pl.BlockSpec((1, T, D), per_b),
        compiler_params=pltpu.CompilerParams(
            dimension_semantics=("parallel", "arbitrary")),
    )(x, x_enc, trg_bias, src_bias,
      params["wqkv"], params["wo"],
      params["wff1"], params["bff1"], params["wff2"],
      params["vecs"])


# ----------------------------------------------------------------------------
# Parameter construction (deterministic) + full Decoder forward
# ----------------------------------------------------------------------------

def make_positional_encoding(d_model, max_len):
    position = jnp.arange(max_len, dtype=jnp.float32)[:, None] * jnp.ones(
        (1, d_model), jnp.float32)
    exponent = 10000.0 ** (jnp.arange(d_model, dtype=jnp.float32)[None, :] / d_model)
    pe = position / exponent
    pe = pe.at[:, ::2].set(jnp.sin(pe[:, ::2]))
    pe = pe.at[:, 1::2].set(jnp.cos(pe[:, 1::2]))
    return pe[None]  # (1, max_len, d_model)


def init_decoder_params(key, d_model, heads, num_layers, trg_vocab_size, max_len):
    d_k = d_model // heads
    ks = jax.random.split(key, 8)
    s = 0.02
    wqkv = jax.random.normal(ks[1], (num_layers, d_model, 3 * d_model), jnp.float32) * s
    # Fold the 1/sqrt(d_k) attention scale into the Q columns (used by both the
    # self- and cross-attention, which share this weight per the source).
    wqkv = wqkv.at[:, :, :d_model].multiply(1.0 / math.sqrt(d_k))

    ln = jnp.tile(
        jnp.array([1.0, 0.0, 1.0, 0.0, 1.0, 0.0], jnp.float32)[None, :, None],
        (num_layers, 1, d_model))  # rows: [g1, b1, g2, b2, g3, b3]
    bo = jax.random.normal(ks[3], (num_layers, 1, d_model), jnp.float32) * s
    bff2 = jax.random.normal(ks[7], (num_layers, 1, d_model), jnp.float32) * s
    vecs = jnp.concatenate([ln, bo, bff2], axis=1)  # (L, 8, D)

    return {
        "emb": jax.random.normal(ks[0], (trg_vocab_size, d_model), jnp.float32) * s,
        "pe": make_positional_encoding(d_model, max_len),
        "wqkv": wqkv,
        "wo": jax.random.normal(ks[2], (num_layers, d_model, d_model), jnp.float32) * s,
        "wff1": jax.random.normal(ks[4], (num_layers, d_model, 4 * d_model), jnp.float32) * s,
        "bff1": jax.random.normal(ks[5], (num_layers, 1, 4 * d_model), jnp.float32) * s,
        "wff2": jax.random.normal(ks[6], (num_layers, 4 * d_model, d_model), jnp.float32) * s,
        "vecs": vecs,
    }


def decoder_forward(params, x_enc, x_ids, trg_mask, src_mask, *, heads):
    # Embedding lookup (glue) + PositionalEncoding: x + x + pe[:, :T]
    x = params["emb"][x_ids]                          # (B, T, D)
    T = x.shape[1]
    x = x + x + params["pe"][:, :T]

    # Precompute additive mask biases once (finite negative -> no -inf NaNs,
    # robust comparison instead of float == 0).
    trg_bias = jnp.where(trg_mask > 0.5, 0.0, -1e30).astype(jnp.float32)
    src_bias = jnp.where(src_mask > 0.5, 0.0, -1e30).astype(jnp.float32)

    return run_decoder(x, x_enc, trg_bias, src_bias, params, heads=heads)


# ----------------------------------------------------------------------------
# main
# ----------------------------------------------------------------------------

if __name__ == "__main__":
    d_model = 32
    heads = 4
    num_layers = 2
    max_len = 16
    trg_vocab_size = 50
    B, T, T_enc = 2, 8, 8

    key = jax.random.PRNGKey(0)
    k_par, k_ids, k_enc = jax.random.split(key, 3)

    params = init_decoder_params(k_par, d_model, heads, num_layers,
                                 trg_vocab_size, max_len)

    x_ids = jax.random.randint(k_ids, (B, T), 0, trg_vocab_size, dtype=jnp.int32)
    x_enc = jax.random.normal(k_enc, (B, T_enc, d_model), jnp.float32)

    # trg_mask: causal (T, T); src_mask: all-ones (T, T_enc). 0 -> masked.
    trg_mask = jnp.tril(jnp.ones((T, T), jnp.float32))
    src_mask = jnp.ones((T, T_enc), jnp.float32)

    fwd = jax.jit(functools.partial(decoder_forward, heads=heads))
    out = fwd(params, x_enc, x_ids, trg_mask, src_mask)
    jax.block_until_ready(out)

    assert out.shape == (B, T, d_model)
    assert bool(jnp.all(jnp.isfinite(out)))
    print("KERNEL_OK")
</pallas_src>

<mosaic_0001>
module attributes {stable_mosaic.version = 11 : i64} {
  func.func @decoder_block_kernel(%arg0: i32, %arg1: i32, %arg2: memref<1x8x32xf32, #tpu.memory_space<vmem>>, %arg3: memref<1x8x32xf32, #tpu.memory_space<vmem>>, %arg4: memref<8x8xf32, #tpu.memory_space<vmem>>, %arg5: memref<8x8xf32, #tpu.memory_space<vmem>>, %arg6: memref<1x32x96xf32, #tpu.memory_space<vmem>>, %arg7: memref<1x32x32xf32, #tpu.memory_space<vmem>>, %arg8: memref<1x32x128xf32, #tpu.memory_space<vmem>>, %arg9: memref<1x1x128xf32, #tpu.memory_space<vmem>>, %arg10: memref<1x128x32xf32, #tpu.memory_space<vmem>>, %arg11: memref<1x8x32xf32, #tpu.memory_space<vmem>>, %arg12: memref<1x8x32xf32, #tpu.memory_space<vmem>>) attributes {dimension_semantics = [#tpu.dimension_semantics<parallel>, #tpu.dimension_semantics<arbitrary>], iteration_bounds = array<i64: 2, 2>, scalar_prefetch = 0 : i64, scratch_operands = 0 : i64, tpu.core_type = #tpu.core_type<tc>, window_params = [{transform_indices = @transform_0, window_bounds = array<i64: 1, 8, 32>}, {transform_indices = @transform_1, window_bounds = array<i64: 1, 8, 32>}, {pipeline_mode = #tpu.pipeline_mode<synchronous>, transform_indices = @transform_2, window_bounds = array<i64: 8, 8>}, {pipeline_mode = #tpu.pipeline_mode<synchronous>, transform_indices = @transform_3, window_bounds = array<i64: 8, 8>}, {transform_indices = @transform_4, window_bounds = array<i64: 1, 32, 96>}, {transform_indices = @transform_5, window_bounds = array<i64: 1, 32, 32>}, {transform_indices = @transform_6, window_bounds = array<i64: 1, 32, 128>}, {transform_indices = @transform_7, window_bounds = array<i64: 1, 1, 128>}, {transform_indices = @transform_8, window_bounds = array<i64: 1, 128, 32>}, {transform_indices = @transform_9, window_bounds = array<i64: 1, 8, 32>}, {transform_indices = @transform_10, window_bounds = array<i64: 1, 8, 32>}]} {
    %c0_i32 = arith.constant 0 : i32
    %0 = arith.cmpi eq, %arg1, %c0_i32 : i32
    %1 = arith.extui %0 : i1 to i32
    %c0_i32_0 = arith.constant 0 : i32
    %2 = arith.cmpi ne, %1, %c0_i32_0 : i32
    scf.if %2 {
      %c0_93 = arith.constant 0 : index
      %c0_94 = arith.constant 0 : index
      %c0_95 = arith.constant 0 : index
      %277 = vector.load %arg2[%c0_93, %c0_94, %c0_95] : memref<1x8x32xf32, #tpu.memory_space<vmem>>, vector<1x8x32xf32>
      %278 = vector.shape_cast %277 : vector<1x8x32xf32> to vector<8x32xf32>
      %c0_96 = arith.constant 0 : index
      %c0_97 = arith.constant 0 : index
      %c0_98 = arith.constant 0 : index
      %279 = vector.load %arg12[%c0_96, %c0_97, %c0_98] : memref<1x8x32xf32, #tpu.memory_space<vmem>>, vector<1x8x32xf32>
      %280 = vector.shape_cast %279 : vector<1x8x32xf32> to vector<8x32xf32>
      %281 = vector.shape_cast %278 : vector<8x32xf32> to vector<1x8x32xf32>
      tpu.vector_store %arg12[%c0_96, %c0_97, %c0_98], %281 {strides = array<i32>} : memref<1x8x32xf32, #tpu.memory_space<vmem>>, vector<1x8x32xf32>,
    } else {
    }
    %c0 = arith.constant 0 : index
    %c0_1 = arith.constant 0 : index
    %c0_2 = arith.constant 0 : index
    %3 = vector.load %arg12[%c0, %c0_1, %c0_2] : memref<1x8x32xf32, #tpu.memory_space<vmem>>, vector<1x8x32xf32>
    %4 = vector.shape_cast %3 : vector<1x8x32xf32> to vector<8x32xf32>
    %c0_3 = arith.constant 0 : index
    %c0_4 = arith.constant 0 : index
    %c0_5 = arith.constant 0 : index
    %5 = vector.load %arg3[%c0_3, %c0_4, %c0_5] : memref<1x8x32xf32, #tpu.memory_space<vmem>>, vector<1x8x32xf32>
    %6 = vector.shape_cast %5 : vector<1x8x32xf32> to vector<8x32xf32>
    %c0_6 = arith.constant 0 : index
    %c0_7 = arith.constant 0 : index
    %c0_8 = arith.constant 0 : index
    %7 = vector.load %arg6[%c0_6, %c0_7, %c0_8] : memref<1x32x96xf32, #tpu.memory_space<vmem>>, vector<1x32x96xf32>
    %8 = vector.shape_cast %7 : vector<1x32x96xf32> to vector<32x96xf32>
    %c0_9 = arith.constant 0 : index
    %c0_10 = arith.constant 0 : index
    %c0_11 = arith.constant 0 : index
    %9 = vector.load %arg7[%c0_9, %c0_10, %c0_11] : memref<1x32x32xf32, #tpu.memory_space<vmem>>, vector<1x32x32xf32>
    %10 = vector.shape_cast %9 : vector<1x32x32xf32> to vector<32x32xf32>
    %c0_12 = arith.constant 0 : index
    %c0_13 = arith.constant 0 : index
    %c0_14 = arith.constant 0 : index
    %11 = vector.load %arg11[%c0_12, %c0_13, %c0_14] : memref<1x8x32xf32, #tpu.memory_space<vmem>>, vector<1x8x32xf32>
    %12 = vector.shape_cast %11 : vector<1x8x32xf32> to vector<8x32xf32>
    %13 = vector.extract_strided_slice %12 {offsets = [0, 0], sizes = [1, 32], strides = [1, 1]} : vector<8x32xf32> to vector<1x32xf32>
    %14 = vector.extract_strided_slice %12 {offsets = [1, 0], sizes = [1, 32], strides = [1, 1]} : vector<8x32xf32> to vector<1x32xf32>
    %15 = vector.extract_strided_slice %12 {offsets = [2, 0], sizes = [1, 32], strides = [1, 1]} : vector<8x32xf32> to vector<1x32xf32>
    %16 = vector.extract_strided_slice %12 {offsets = [3, 0], sizes = [1, 32], strides = [1, 1]} : vector<8x32xf32> to vector<1x32xf32>
    %17 = vector.extract_strided_slice %12 {offsets = [4, 0], sizes = [1, 32], strides = [1, 1]} : vector<8x32xf32> to vector<1x32xf32>
    %18 = vector.extract_strided_slice %12 {offsets = [5, 0], sizes = [1, 32], strides = [1, 1]} : vector<8x32xf32> to vector<1x32xf32>
    %19 = vector.extract_strided_slice %12 {offsets = [6, 0], sizes = [1, 32], strides = [1, 1]} : vector<8x32xf32> to vector<1x32xf32>
    %20 = vector.extract_strided_slice %12 {offsets = [7, 0], sizes = [1, 32], strides = [1, 1]} : vector<8x32xf32> to vector<1x32xf32>
    %c0_15 = arith.constant 0 : index
    %c0_16 = arith.constant 0 : index
    %21 = vector.load %arg4[%c0_15, %c0_16] : memref<8x8xf32, #tpu.memory_space<vmem>>, vector<8x8xf32>
    %cst = arith.constant dense<0.000000e+00> : vector<8x96xf32>
    %22 = tpu.matmul %4, %8, %cst {dimension_numbers = #tpu.dot_dimension_numbers<[1], [0], [0], [1], [0, 0, 1, 1], [], []>} : vector<8x32xf32>, vector<32x96xf32>, vector<8x96xf32> -> vector<8x96xf32>
    %23 = vector.extract_strided_slice %22 {offsets = [0, 0], sizes = [8, 32], strides = [1, 1]} : vector<8x96xf32> to vector<8x32xf32>
    %24 = vector.extract_strided_slice %22 {offsets = [0, 32], sizes = [8, 32], strides = [1, 1]} : vector<8x96xf32> to vector<8x32xf32>
    %25 = vector.extract_strided_slice %22 {offsets = [0, 64], sizes = [8, 32], strides = [1, 1]} : vector<8x96xf32> to vector<8x32xf32>
    %cst_17 = arith.constant 0.000000e+00 : f32
    %26 = vector.broadcast %cst_17 : f32 to vector<8x32xf32>
    %27 = vector.extract_strided_slice %23 {offsets = [0, 0], sizes = [8, 8], strides = [1, 1]} : vector<8x32xf32> to vector<8x8xf32>
    %28 = vector.extract_strided_slice %24 {offsets = [0, 0], sizes = [8, 8], strides = [1, 1]} : vector<8x32xf32> to vector<8x8xf32>
    %29 = vector.extract_strided_slice %25 {offsets = [0, 0], sizes = [8, 8], strides = [1, 1]} : vector<8x32xf32> to vector<8x8xf32>
    %cst_18 = arith.constant dense<0.000000e+00> : vector<8x8xf32>
    %30 = tpu.matmul %27, %28, %cst_18 {dimension_numbers = #tpu.dot_dimension_numbers<[1], [1], [0], [0], [0, 0, 1, 0], [], []>} : vector<8x8xf32>, vector<8x8xf32>, vector<8x8xf32> -> vector<8x8xf32>
    %31 = arith.addf %30, %21 : vector<8x8xf32>
    %cst_19 = arith.constant dense<0xFF800000> : vector<8xf32>
    %32 = vector.multi_reduction <maximumf>, %31, %cst_19 [1] : vector<8x8xf32> to vector<8xf32>
    %33 = vector.shape_cast %32 : vector<8xf32> to vector<8x1xf32>
    %34 = vector.broadcast %33 : vector<8x1xf32> to vector<8x8xf32>
    %35 = arith.subf %31, %34 : vector<8x8xf32>
    %36 = math.exp %35 : vector<8x8xf32>
    %cst_20 = arith.constant dense<0.000000e+00> : vector<8xf32>
    %37 = vector.multi_reduction <add>, %36, %cst_20 [1] : vector<8x8xf32> to vector<8xf32>
    %38 = vector.shape_cast %37 : vector<8xf32> to vector<8x1xf32>
    %39 = tpu.reciprocal %38 {approx = true} : vector<8x1xf32> -> vector<8x1xf32>
    %40 = vector.broadcast %39 : vector<8x1xf32> to vector<8x8xf32>
    %41 = arith.mulf %36, %40 : vector<8x8xf32>
    %cst_21 = arith.constant dense<0.000000e+00> : vector<8x8xf32>
    %42 = tpu.matmul %41, %29, %cst_21 {dimension_numbers = #tpu.dot_dimension_numbers<[1], [0], [0], [1], [0, 0, 1, 1], [], []>} : vector<8x8xf32>, vector<8x8xf32>, vector<8x8xf32> -> vector<8x8xf32>
    %43 = vector.extract_strided_slice %10 {offsets = [0, 0], sizes = [8, 32], strides = [1, 1]} : vector<32x32xf32> to vector<8x32xf32>
    %cst_22 = arith.constant dense<0.000000e+00> : vector<8x32xf32>
    %44 = tpu.matmul %42, %43, %cst_22 {dimension_numbers = #tpu.dot_dimension_numbers<[1], [0], [0], [1], [0, 0, 1, 1], [], []>} : vector<8x8xf32>, vector<8x32xf32>, vector<8x32xf32> -> vector<8x32xf32>
    %45 = arith.addf %26, %44 : vector<8x32xf32>
    %46 = vector.extract_strided_slice %23 {offsets = [0, 8], sizes = [8, 8], strides = [1, 1]} : vector<8x32xf32> to vector<8x8xf32>
    %47 = vector.extract_strided_slice %24 {offsets = [0, 8], sizes = [8, 8], strides = [1, 1]} : vector<8x32xf32> to vector<8x8xf32>
    %48 = vector.extract_strided_slice %25 {offsets = [0, 8], sizes = [8, 8], strides = [1, 1]} : vector<8x32xf32> to vector<8x8xf32>
    %cst_23 = arith.constant dense<0.000000e+00> : vector<8x8xf32>
    %49 = tpu.matmul %46, %47, %cst_23 {dimension_numbers = #tpu.dot_dimension_numbers<[1], [1], [0], [0], [0, 0, 1, 0], [], []>} : vector<8x8xf32>, vector<8x8xf32>, vector<8x8xf32> -> vector<8x8xf32>
    %50 = arith.addf %49, %21 : vector<8x8xf32>
    %cst_24 = arith.constant dense<0xFF800000> : vector<8xf32>
    %51 = vector.multi_reduction <maximumf>, %50, %cst_24 [1] : vector<8x8xf32> to vector<8xf32>
    %52 = vector.shape_cast %51 : vector<8xf32> to vector<8x1xf32>
    %53 = vector.broadcast %52 : vector<8x1xf32> to vector<8x8xf32>
    %54 = arith.subf %50, %53 : vector<8x8xf32>
    %55 = math.exp %54 : vector<8x8xf32>
    %cst_25 = arith.constant dense<0.000000e+00> : vector<8xf32>
    %56 = vector.multi_reduction <add>, %55, %cst_25 [1] : vector<8x8xf32> to vector<8xf32>
    %57 = vector.shape_cast %56 : vector<8xf32> to vector<8x1xf32>
    %58 = tpu.reciprocal %57 {approx = true} : vector<8x1xf32> -> vector<8x1xf32>
    %59 = vector.broadcast %58 : vector<8x1xf32> to vector<8x8xf32>
    %60 = arith.mulf %55, %59 : vector<8x8xf32>
    %cst_26 = arith.constant dense<0.000000e+00> : vector<8x8xf32>
    %61 = tpu.matmul %60, %48, %cst_26 {dimension_numbers = #tpu.dot_dimension_numbers<[1], [0], [0], [1], [0, 0, 1, 1], [], []>} : vector<8x8xf32>, vector<8x8xf32>, vector<8x8xf32> -> vector<8x8xf32>
    %62 = vector.extract_strided_slice %10 {offsets = [8, 0], sizes = [8, 32], strides = [1, 1]} : vector<32x32xf32> to vector<8x32xf32>
    %cst_27 = arith.constant dense<0.000000e+00> : vector<8x32xf32>
    %63 = tpu.matmul %61, %62, %cst_27 {dimension_numbers = #tpu.dot_dimension_numbers<[1], [0], [0], [1], [0, 0, 1, 1], [], []>} : vector<8x8xf32>, vector<8x32xf32>, vector<8x32xf32> -> vector<8x32xf32>
    %64 = arith.addf %45, %63 : vector<8x32xf32>
    %65 = vector.extract_strided_slice %23 {offsets = [0, 16], sizes = [8, 8], strides = [1, 1]} : vector<8x32xf32> to vector<8x8xf32>
    %66 = vector.extract_strided_slice %24 {offsets = [0, 16], sizes = [8, 8], strides = [1, 1]} : vector<8x32xf32> to vector<8x8xf32>
    %67 = vector.extract_strided_slice %25 {offsets = [0, 16], sizes = [8, 8], strides = [1, 1]} : vector<8x32xf32> to vector<8x8xf32>
    %cst_28 = arith.constant dense<0.000000e+00> : vector<8x8xf32>
    %68 = tpu.matmul %65, %66, %cst_28 {dimension_numbers = #tpu.dot_dimension_numbers<[1], [1], [0], [0], [0, 0, 1, 0], [], []>} : vector<8x8xf32>, vector<8x8xf32>, vector<8x8xf32> -> vector<8x8xf32>
    %69 = arith.addf %68, %21 : vector<8x8xf32>
    %cst_29 = arith.constant dense<0xFF800000> : vector<8xf32>
    %70 = vector.multi_reduction <maximumf>, %69, %cst_29 [1] : vector<8x8xf32> to vector<8xf32>
    %71 = vector.shape_cast %70 : vector<8xf32> to vector<8x1xf32>
    %72 = vector.broadcast %71 : vector<8x1xf32> to vector<8x8xf32>
    %73 = arith.subf %69, %72 : vector<8x8xf32>
    %74 = math.exp %73 : vector<8x8xf32>
    %cst_30 = arith.constant dense<0.000000e+00> : vector<8xf32>
    %75 = vector.multi_reduction <add>, %74, %cst_30 [1] : vector<8x8xf32> to vector<8xf32>
    %76 = vector.shape_cast %75 : vector<8xf32> to vector<8x1xf32>
    %77 = tpu.reciprocal %76 {approx = true} : vector<8x1xf32> -> vector<8x1xf32>
    %78 = vector.broadcast %77 : vector<8x1xf32> to vector<8x8xf32>
    %79 = arith.mulf %74, %78 : vector<8x8xf32>
    %cst_31 = arith.constant dense<0.000000e+00> : vector<8x8xf32>
    %80 = tpu.matmul %79, %67, %cst_31 {dimension_numbers = #tpu.dot_dimension_numbers<[1], [0], [0], [1], [0, 0, 1, 1], [], []>} : vector<8x8xf32>, vector<8x8xf32>, vector<8x8xf32> -> vector<8x8xf32>
    %81 = vector.extract_strided_slice %10 {offsets = [16, 0], sizes = [8, 32], strides = [1, 1]} : vector<32x32xf32> to vector<8x32xf32>
    %cst_32 = arith.constant dense<0.000000e+00> : vector<8x32xf32>
    %82 = tpu.matmul %80, %81, %cst_32 {dimension_numbers = #tpu.dot_dimension_numbers<[1], [0], [0], [1], [0, 0, 1, 1], [], []>} : vector<8x8xf32>, vector<8x32xf32>, vector<8x32xf32> -> vector<8x32xf32>
    %83 = arith.addf %64, %82 : vector<8x32xf32>
    %84 = vector.extract_strided_slice %23 {offsets = [0, 24], sizes = [8, 8], strides = [1, 1]} : vector<8x32xf32> to vector<8x8xf32>
    %85 = vector.extract_strided_slice %24 {offsets = [0, 24], sizes = [8, 8], strides = [1, 1]} : vector<8x32xf32> to vector<8x8xf32>
    %86 = vector.extract_strided_slice %25 {offsets = [0, 24], sizes = [8, 8], strides = [1, 1]} : vector<8x32xf32> to vector<8x8xf32>
    %cst_33 = arith.constant dense<0.000000e+00> : vector<8x8xf32>
    %87 = tpu.matmul %84, %85, %cst_33 {dimension_numbers = #tpu.dot_dimension_numbers<[1], [1], [0], [0], [0, 0, 1, 0], [], []>} : vector<8x8xf32>, vector<8x8xf32>, vector<8x8xf32> -> vector<8x8xf32>
    %88 = arith.addf %87, %21 : vector<8x8xf32>
    %cst_34 = arith.constant dense<0xFF800000> : vector<8xf32>
    %89 = vector.multi_reduction <maximumf>, %88, %cst_34 [1] : vector<8x8xf32> to vector<8xf32>
    %90 = vector.shape_cast %89 : vector<8xf32> to vector<8x1xf32>
    %91 = vector.broadcast %90 : vector<8x1xf32> to vector<8x8xf32>
    %92 = arith.subf %88, %91 : vector<8x8xf32>
    %93 = math.exp %92 : vector<8x8xf32>
    %cst_35 = arith.constant dense<0.000000e+00> : vector<8xf32>
    %94 = vector.multi_reduction <add>, %93, %cst_35 [1] : vector<8x8xf32> to vector<8xf32>
    %95 = vector.shape_cast %94 : vector<8xf32> to vector<8x1xf32>
    %96 = tpu.reciprocal %95 {approx = true} : vector<8x1xf32> -> vector<8x1xf32>
    %97 = vector.broadcast %96 : vector<8x1xf32> to vector<8x8xf32>
    %98 = arith.mulf %93, %97 : vector<8x8xf32>
    %cst_36 = arith.constant dense<0.000000e+00> : vector<8x8xf32>
    %99 = tpu.matmul %98, %86, %cst_36 {dimension_numbers = #tpu.dot_dimension_numbers<[1], [0], [0], [1], [0, 0, 1, 1], [], []>} : vector<8x8xf32>, vector<8x8xf32>, vector<8x8xf32> -> vector<8x8xf32>
    %100 = vector.extract_strided_slice %10 {offsets = [24, 0], sizes = [8, 32], strides = [1, 1]} : vector<32x32xf32> to vector<8x32xf32>
    %cst_37 = arith.constant dense<0.000000e+00> : vector<8x32xf32>
    %101 = tpu.matmul %99, %100, %cst_37 {dimension_numbers = #tpu.dot_dimension_numbers<[1], [0], [0], [1], [0, 0, 1, 1], [], []>} : vector<8x8xf32>, vector<8x32xf32>, vector<8x32xf32> -> vector<8x32xf32>
    %102 = arith.addf %83, %101 : vector<8x32xf32>
    %103 = vector.broadcast %19 : vector<1x32xf32> to vector<8x32xf32>
    %104 = arith.addf %102, %103 : vector<8x32xf32>
    %105 = arith.addf %104, %4 : vector<8x32xf32>
    %cst_38 = arith.constant dense<0.000000e+00> : vector<8xf32>
    %106 = vector.multi_reduction <add>, %105, %cst_38 [1] : vector<8x32xf32> to vector<8xf32>
    %107 = vector.shape_cast %106 : vector<8xf32> to vector<8x1xf32>
    %cst_39 = arith.constant 3.200000e+01 : f32
    %108 = vector.broadcast %cst_39 : f32 to vector<8x1xf32>
    %109 = arith.divf %107, %108 : vector<8x1xf32>
    %110 = vector.broadcast %109 : vector<8x1xf32> to vector<8x32xf32>
    %111 = arith.subf %105, %110 : vector<8x32xf32>
    %112 = arith.mulf %111, %111 : vector<8x32xf32>
    %cst_40 = arith.constant dense<0.000000e+00> : vector<8xf32>
    %113 = vector.multi_reduction <add>, %112, %cst_40 [1] : vector<8x32xf32> to vector<8xf32>
    %114 = vector.shape_cast %113 : vector<8xf32> to vector<8x1xf32>
    %cst_41 = arith.constant 3.200000e+01 : f32
    %115 = vector.broadcast %cst_41 : f32 to vector<8x1xf32>
    %116 = arith.divf %114, %115 : vector<8x1xf32>
    %117 = vector.broadcast %109 : vector<8x1xf32> to vector<8x32xf32>
    %118 = arith.subf %105, %117 : vector<8x32xf32>
    %cst_42 = arith.constant 9.99999974E-6 : f32
    %119 = vector.broadcast %cst_42 : f32 to vector<8x1xf32>
    %120 = arith.addf %116, %119 : vector<8x1xf32>
    %121 = math.rsqrt %120 : vector<8x1xf32>
    %122 = vector.broadcast %121 : vector<8x1xf32> to vector<8x32xf32>
    %123 = arith.mulf %118, %122 : vector<8x32xf32>
    %124 = vector.broadcast %13 : vector<1x32xf32> to vector<8x32xf32>
    %125 = arith.mulf %123, %124 : vector<8x32xf32>
    %126 = vector.broadcast %14 : vector<1x32xf32> to vector<8x32xf32>
    %127 = arith.addf %125, %126 : vector<8x32xf32>
    %c0_43 = arith.constant 0 : index
    %c0_44 = arith.constant 0 : index
    %128 = vector.load %arg5[%c0_43, %c0_44] : memref<8x8xf32, #tpu.memory_space<vmem>>, vector<8x8xf32>
    %129 = vector.extract_strided_slice %8 {offsets = [0, 0], sizes = [32, 32], strides = [1, 1]} : vector<32x96xf32> to vector<32x32xf32>
    %cst_45 = arith.constant dense<0.000000e+00> : vector<8x32xf32>
    %130 = tpu.matmul %127, %129, %cst_45 {dimension_numbers = #tpu.dot_dimension_numbers<[1], [0], [0], [1], [0, 0, 1, 1], [], []>} : vector<8x32xf32>, vector<32x32xf32>, vector<8x32xf32> -> vector<8x32xf32>
    %131 = vector.extract_strided_slice %8 {offsets = [0, 32], sizes = [32, 64], strides = [1, 1]} : vector<32x96xf32> to vector<32x64xf32>
    %cst_46 = arith.constant dense<0.000000e+00> : vector<8x64xf32>
    %132 = tpu.matmul %6, %131, %cst_46 {dimension_numbers = #tpu.dot_dimension_numbers<[1], [0], [0], [1], [0, 0, 1, 1], [], []>} : vector<8x32xf32>, vector<32x64xf32>, vector<8x64xf32> -> vector<8x64xf32>
    %133 = vector.extract_strided_slice %132 {offsets = [0, 0], sizes = [8, 32], strides = [1, 1]} : vector<8x64xf32> to vector<8x32xf32>
    %134 = vector.extract_strided_slice %132 {offsets = [0, 32], sizes = [8, 32], strides = [1, 1]} : vector<8x64xf32> to vector<8x32xf32>
    %cst_47 = arith.constant 0.000000e+00 : f32
    %135 = vector.broadcast %cst_47 : f32 to vector<8x32xf32>
    %136 = vector.extract_strided_slice %130 {offsets = [0, 0], sizes = [8, 8], strides = [1, 1]} : vector<8x32xf32> to vector<8x8xf32>
    %137 = vector.extract_strided_slice %133 {offsets = [0, 0], sizes = [8, 8], strides = [1, 1]} : vector<8x32xf32> to vector<8x8xf32>
    %138 = vector.extract_strided_slice %134 {offsets = [0, 0], sizes = [8, 8], strides = [1, 1]} : vector<8x32xf32> to vector<8x8xf32>
    %cst_48 = arith.constant dense<0.000000e+00> : vector<8x8xf32>
    %139 = tpu.matmul %136, %137, %cst_48 {dimension_numbers = #tpu.dot_dimension_numbers<[1], [1], [0], [0], [0, 0, 1, 0], [], []>} : vector<8x8xf32>, vector<8x8xf32>, vector<8x8xf32> -> vector<8x8xf32>
    %140 = arith.addf %139, %128 : vector<8x8xf32>
    %cst_49 = arith.constant dense<0xFF800000> : vector<8xf32>
    %141 = vector.multi_reduction <maximumf>, %140, %cst_49 [1] : vector<8x8xf32> to vector<8xf32>
    %142 = vector.shape_cast %141 : vector<8xf32> to vector<8x1xf32>
    %143 = vector.broadcast %142 : vector<8x1xf32> to vector<8x8xf32>
    %144 = arith.subf %140, %143 : vector<8x8xf32>
    %145 = math.exp %144 : vector<8x8xf32>
    %cst_50 = arith.constant dense<0.000000e+00> : vector<8xf32>
    %146 = vector.multi_reduction <add>, %145, %cst_50 [1] : vector<8x8xf32> to vector<8xf32>
    %147 = vector.shape_cast %146 : vector<8xf32> to vector<8x1xf32>
    %148 = tpu.reciprocal %147 {approx = true} : vector<8x1xf32> -> vector<8x1xf32>
    %149 = vector.broadcast %148 : vector<8x1xf32> to vector<8x8xf32>
    %150 = arith.mulf %145, %149 : vector<8x8xf32>
    %cst_51 = arith.constant dense<0.000000e+00> : vector<8x8xf32>
    %151 = tpu.matmul %150, %138, %cst_51 {dimension_numbers = #tpu.dot_dimension_numbers<[1], [0], [0], [1], [0, 0, 1, 1], [], []>} : vector<8x8xf32>, vector<8x8xf32>, vector<8x8xf32> -> vector<8x8xf32>
    %152 = vector.extract_strided_slice %10 {offsets = [0, 0], sizes = [8, 32], strides = [1, 1]} : vector<32x32xf32> to vector<8x32xf32>
    %cst_52 = arith.constant dense<0.000000e+00> : vector<8x32xf32>
    %153 = tpu.matmul %151, %152, %cst_52 {dimension_numbers = #tpu.dot_dimension_numbers<[1], [0], [0], [1], [0, 0, 1, 1], [], []>} : vector<8x8xf32>, vector<8x32xf32>, vector<8x32xf32> -> vector<8x32xf32>
    %154 = arith.addf %135, %153 : vector<8x32xf32>
    %155 = vector.extract_strided_slice %130 {offsets = [0, 8], sizes = [8, 8], strides = [1, 1]} : vector<8x32xf32> to vector<8x8xf32>
    %156 = vector.extract_strided_slice %133 {offsets = [0, 8], sizes = [8, 8], strides = [1, 1]} : vector<8x32xf32> to vector<8x8xf32>
    %157 = vector.extract_strided_slice %134 {offsets = [0, 8], sizes = [8, 8], strides = [1, 1]} : vector<8x32xf32> to vector<8x8xf32>
    %cst_53 = arith.constant dense<0.000000e+00> : vector<8x8xf32>
    %158 = tpu.matmul %155, %156, %cst_53 {dimension_numbers = #tpu.dot_dimension_numbers<[1], [1], [0], [0], [0, 0, 1, 0], [], []>} : vector<8x8xf32>, vector<8x8xf32>, vector<8x8xf32> -> vector<8x8xf32>
    %159 = arith.addf %158, %128 : vector<8x8xf32>
    %cst_54 = arith.constant dense<0xFF800000> : vector<8xf32>
    %160 = vector.multi_reduction <maximumf>, %159, %cst_54 [1] : vector<8x8xf32> to vector<8xf32>
    %161 = vector.shape_cast %160 : vector<8xf32> to vector<8x1xf32>
    %162 = vector.broadcast %161 : vector<8x1xf32> to vector<8x8xf32>
    %163 = arith.subf %159, %162 : vector<8x8xf32>
    %164 = math.exp %163 : vector<8x8xf32>
    %cst_55 = arith.constant dense<0.000000e+00> : vector<8xf32>
    %165 = vector.multi_reduction <add>, %164, %cst_55 [1] : vector<8x8xf32> to vector<8xf32>
    %166 = vector.shape_cast %165 : vector<8xf32> to vector<8x1xf32>
    %167 = tpu.reciprocal %166 {approx = true} : vector<8x1xf32> -> vector<8x1xf32>
    %168 = vector.broadcast %167 : vector<8x1xf32> to vector<8x8xf32>
    %169 = arith.mulf %164, %168 : vector<8x8xf32>
    %cst_56 = arith.constant dense<0.000000e+00> : vector<8x8xf32>
    %170 = tpu.matmul %169, %157, %cst_56 {dimension_numbers = #tpu.dot_dimension_numbers<[1], [0], [0], [1], [0, 0, 1, 1], [], []>} : vector<8x8xf32>, vector<8x8xf32>, vector<8x8xf32> -> vector<8x8xf32>
    %171 = vector.extract_strided_slice %10 {offsets = [8, 0], sizes = [8, 32], strides = [1, 1]} : vector<32x32xf32> to vector<8x32xf32>
    %cst_57 = arith.constant dense<0.000000e+00> : vector<8x32xf32>
    %172 = tpu.matmul %170, %171, %cst_57 {dimension_numbers = #tpu.dot_dimension_numbers<[1], [0], [0], [1], [0, 0, 1, 1], [], []>} : vector<8x8xf32>, vector<8x32xf32>, vector<8x32xf32> -> vector<8x32xf32>
    %173 = arith.addf %154, %172 : vector<8x32xf32>
    %174 = vector.extract_strided_slice %130 {offsets = [0, 16], sizes = [8, 8], strides = [1, 1]} : vector<8x32xf32> to vector<8x8xf32>
    %175 = vector.extract_strided_slice %133 {offsets = [0, 16], sizes = [8, 8], strides = [1, 1]} : vector<8x32xf32> to vector<8x8xf32>
    %176 = vector.extract_strided_slice %134 {offsets = [0, 16], sizes = [8, 8], strides = [1, 1]} : vector<8x32xf32> to vector<8x8xf32>
    %cst_58 = arith.constant dense<0.000000e+00> : vector<8x8xf32>
    %177 = tpu.matmul %174, %175, %cst_58 {dimension_numbers = #tpu.dot_dimension_numbers<[1], [1], [0], [0], [0, 0, 1, 0], [], []>} : vector<8x8xf32>, vector<8x8xf32>, vector<8x8xf32> -> vector<8x8xf32>
    %178 = arith.addf %177, %128 : vector<8x8xf32>
    %cst_59 = arith.constant dense<0xFF800000> : vector<8xf32>
    %179 = vector.multi_reduction <maximumf>, %178, %cst_59 [1] : vector<8x8xf32> to vector<8xf32>
    %180 = vector.shape_cast %179 : vector<8xf32> to vector<8x1xf32>
    %181 = vector.broadcast %180 : vector<8x1xf32> to vector<8x8xf32>
    %182 = arith.subf %178, %181 : vector<8x8xf32>
    %183 = math.exp %182 : vector<8x8xf32>
    %cst_60 = arith.constant dense<0.000000e+00> : vector<8xf32>
    %184 = vector.multi_reduction <add>, %183, %cst_60 [1] : vector<8x8xf32> to vector<8xf32>
    %185 = vector.shape_cast %184 : vector<8xf32> to vector<8x1xf32>
    %186 = tpu.reciprocal %185 {approx = true} : vector<8x1xf32> -> vector<8x1xf32>
    %187 = vector.broadcast %186 : vector<8x1xf32> to vector<8x8xf32>
    %188 = arith.mulf %183, %187 : vector<8x8xf32>
    %cst_61 = arith.constant dense<0.000000e+00> : vector<8x8xf32>
    %189 = tpu.matmul %188, %176, %cst_61 {dimension_numbers = #tpu.dot_dimension_numbers<[1], [0], [0], [1], [0, 0, 1, 1], [], []>} : vector<8x8xf32>, vector<8x8xf32>, vector<8x8xf32> -> vector<8x8xf32>
    %190 = vector.extract_strided_slice %10 {offsets = [16, 0], sizes = [8, 32], strides = [1, 1]} : vector<32x32xf32> to vector<8x32xf32>
    %cst_62 = arith.constant dense<0.000000e+00> : vector<8x32xf32>
    %191 = tpu.matmul %189, %190, %cst_62 {dimension_numbers = #tpu.dot_dimension_numbers<[1], [0], [0], [1], [0, 0, 1, 1], [], []>} : vector<8x8xf32>, vector<8x32xf32>, vector<8x32xf32> -> vector<8x32xf32>
    %192 = arith.addf %173, %191 : vector<8x32xf32>
    %193 = vector.extract_strided_slice %130 {offsets = [0, 24], sizes = [8, 8], strides = [1, 1]} : vector<8x32xf32> to vector<8x8xf32>
    %194 = vector.extract_strided_slice %133 {offsets = [0, 24], sizes = [8, 8], strides = [1, 1]} : vector<8x32xf32> to vector<8x8xf32>
    %195 = vector.extract_strided_slice %134 {offsets = [0, 24], sizes = [8, 8], strides = [1, 1]} : vector<8x32xf32> to vector<8x8xf32>
    %cst_63 = arith.constant dense<0.000000e+00> : vector<8x8xf32>
    %196 = tpu.matmul %193, %194, %cst_63 {dimension_numbers = #tpu.dot_dimension_numbers<[1], [1], [0], [0], [0, 0, 1, 0], [], []>} : vector<8x8xf32>, vector<8x8xf32>, vector<8x8xf32> -> vector<8x8xf32>
    %197 = arith.addf %196, %128 : vector<8x8xf32>
    %cst_64 = arith.constant dense<0xFF800000> : vector<8xf32>
    %198 = vector.multi_reduction <maximumf>, %197, %cst_64 [1] : vector<8x8xf32> to vector<8xf32>
    %199 = vector.shape_cast %198 : vector<8xf32> to vector<8x1xf32>
    %200 = vector.broadcast %199 : vector<8x1xf32> to vector<8x8xf32>
    %201 = arith.subf %197, %200 : vector<8x8xf32>
    %202 = math.exp %201 : vector<8x8xf32>
    %cst_65 = arith.constant dense<0.000000e+00> : vector<8xf32>
    %203 = vector.multi_reduction <add>, %202, %cst_65 [1] : vector<8x8xf32> to vector<8xf32>
    %204 = vector.shape_cast %203 : vector<8xf32> to vector<8x1xf32>
    %205 = tpu.reciprocal %204 {approx = true} : vector<8x1xf32> -> vector<8x1xf32>
    %206 = vector.broadcast %205 : vector<8x1xf32> to vector<8x8xf32>
    %207 = arith.mulf %202, %206 : vector<8x8xf32>
    %cst_66 = arith.constant dense<0.000000e+00> : vector<8x8xf32>
    %208 = tpu.matmul %207, %195, %cst_66 {dimension_numbers = #tpu.dot_dimension_numbers<[1], [0], [0], [1], [0, 0, 1, 1], [], []>} : vector<8x8xf32>, vector<8x8xf32>, vector<8x8xf32> -> vector<8x8xf32>
    %209 = vector.extract_strided_slice %10 {offsets = [24, 0], sizes = [8, 32], strides = [1, 1]} : vector<32x32xf32> to vector<8x32xf32>
    %cst_67 = arith.constant dense<0.000000e+00> : vector<8x32xf32>
    %210 = tpu.matmul %208, %209, %cst_67 {dimension_numbers = #tpu.dot_dimension_numbers<[1], [0], [0], [1], [0, 0, 1, 1], [], []>} : vector<8x8xf32>, vector<8x32xf32>, vector<8x32xf32> -> vector<8x32xf32>
    %211 = arith.addf %192, %210 : vector<8x32xf32>
    %212 = vector.broadcast %19 : vector<1x32xf32> to vector<8x32xf32>
    %213 = arith.addf %211, %212 : vector<8x32xf32>
    %214 = arith.addf %127, %213 : vector<8x32xf32>
    %cst_68 = arith.constant dense<0.000000e+00> : vector<8xf32>
    %215 = vector.multi_reduction <add>, %214, %cst_68 [1] : vector<8x32xf32> to vector<8xf32>
    %216 = vector.shape_cast %215 : vector<8xf32> to vector<8x1xf32>
    %cst_69 = arith.constant 3.200000e+01 : f32
    %217 = vector.broadcast %cst_69 : f32 to vector<8x1xf32>
    %218 = arith.divf %216, %217 : vector<8x1xf32>
    %219 = vector.broadcast %218 : vector<8x1xf32> to vector<8x32xf32>
    %220 = arith.subf %214, %219 : vector<8x32xf32>
    %221 = arith.mulf %220, %220 : vector<8x32xf32>
    %cst_70 = arith.constant dense<0.000000e+00> : vector<8xf32>
    %222 = vector.multi_reduction <add>, %221, %cst_70 [1] : vector<8x32xf32> to vector<8xf32>
    %223 = vector.shape_cast %222 : vector<8xf32> to vector<8x1xf32>
    %cst_71 = arith.constant 3.200000e+01 : f32
    %224 = vector.broadcast %cst_71 : f32 to vector<8x1xf32>
    %225 = arith.divf %223, %224 : vector<8x1xf32>
    %226 = vector.broadcast %218 : vector<8x1xf32> to vector<8x32xf32>
    %227 = arith.subf %214, %226 : vector<8x32xf32>
    %cst_72 = arith.constant 9.99999974E-6 : f32
    %228 = vector.broadcast %cst_72 : f32 to vector<8x1xf32>
    %229 = arith.addf %225, %228 : vector<8x1xf32>
    %230 = math.rsqrt %229 : vector<8x1xf32>
    %231 = vector.broadcast %230 : vector<8x1xf32> to vector<8x32xf32>
    %232 = arith.mulf %227, %231 : vector<8x32xf32>
    %233 = vector.broadcast %15 : vector<1x32xf32> to vector<8x32xf32>
    %234 = arith.mulf %232, %233 : vector<8x32xf32>
    %235 = vector.broadcast %16 : vector<1x32xf32> to vector<8x32xf32>
    %236 = arith.addf %234, %235 : vector<8x32xf32>
    %c0_73 = arith.constant 0 : index
    %c0_74 = arith.constant 0 : index
    %c0_75 = arith.constant 0 : index
    %237 = vector.load %arg8[%c0_73, %c0_74, %c0_75] : memref<1x32x128xf32, #tpu.memory_space<vmem>>, vector<1x32x128xf32>
    %238 = vector.shape_cast %237 : vector<1x32x128xf32> to vector<32x128xf32>
    %cst_76 = arith.constant dense<0.000000e+00> : vector<8x128xf32>
    %239 = tpu.matmul %236, %238, %cst_76 {dimension_numbers = #tpu.dot_dimension_numbers<[1], [0], [0], [1], [0, 0, 1, 1], [], []>} : vector<8x32xf32>, vector<32x128xf32>, vector<8x128xf32> -> vector<8x128xf32>
    %c0_77 = arith.constant 0 : index
    %c0_78 = arith.constant 0 : index
    %c0_79 = arith.constant 0 : index
    %240 = vector.load %arg9[%c0_77, %c0_78, %c0_79] : memref<1x1x128xf32, #tpu.memory_space<vmem>>, vector<1x1x128xf32>
    %241 = vector.shape_cast %240 : vector<1x1x128xf32> to vector<1x128xf32>
    %242 = vector.broadcast %241 : vector<1x128xf32> to vector<8x128xf32>
    %243 = arith.addf %239, %242 : vector<8x128xf32>
    %cst_80 = arith.constant 0.000000e+00 : f32
    %244 = vector.broadcast %cst_80 : f32 to vector<8x128xf32>
    %245 = arith.maximumf %243, %244 : vector<8x128xf32>
    %c0_81 = arith.constant 0 : index
    %c0_82 = arith.constant 0 : index
    %c0_83 = arith.constant 0 : index
    %246 = vector.load %arg10[%c0_81, %c0_82, %c0_83] : memref<1x128x32xf32, #tpu.memory_space<vmem>>, vector<1x128x32xf32>
    %247 = vector.shape_cast %246 : vector<1x128x32xf32> to vector<128x32xf32>
    %cst_84 = arith.constant dense<0.000000e+00> : vector<8x32xf32>
    %248 = tpu.matmul %245, %247, %cst_84 {dimension_numbers = #tpu.dot_dimension_numbers<[1], [0], [0], [1], [0, 0, 1, 1], [], []>} : vector<8x128xf32>, vector<128x32xf32>, vector<8x32xf32> -> vector<8x32xf32>
    %249 = vector.broadcast %20 : vector<1x32xf32> to vector<8x32xf32>
    %250 = arith.addf %248, %249 : vector<8x32xf32>
    %251 = arith.addf %236, %250 : vector<8x32xf32>
    %cst_85 = arith.constant dense<0.000000e+00> : vector<8xf32>
    %252 = vector.multi_reduction <add>, %251, %cst_85 [1] : vector<8x32xf32> to vector<8xf32>
    %253 = vector.shape_cast %252 : vector<8xf32> to vector<8x1xf32>
    %cst_86 = arith.constant 3.200000e+01 : f32
    %254 = vector.broadcast %cst_86 : f32 to vector<8x1xf32>
    %255 = arith.divf %253, %254 : vector<8x1xf32>
    %256 = vector.broadcast %255 : vector<8x1xf32> to vector<8x32xf32>
    %257 = arith.subf %251, %256 : vector<8x32xf32>
    %258 = arith.mulf %257, %257 : vector<8x32xf32>
    %cst_87 = arith.constant dense<0.000000e+00> : vector<8xf32>
    %259 = vector.multi_reduction <add>, %258, %cst_87 [1] : vector<8x32xf32> to vector<8xf32>
    %260 = vector.shape_cast %259 : vector<8xf32> to vector<8x1xf32>
    %cst_88 = arith.constant 3.200000e+01 : f32
    %261 = vector.broadcast %cst_88 : f32 to vector<8x1xf32>
    %262 = arith.divf %260, %261 : vector<8x1xf32>
    %263 = vector.broadcast %255 : vector<8x1xf32> to vector<8x32xf32>
    %264 = arith.subf %251, %263 : vector<8x32xf32>
    %cst_89 = arith.constant 9.99999974E-6 : f32
    %265 = vector.broadcast %cst_89 : f32 to vector<8x1xf32>
    %266 = arith.addf %262, %265 : vector<8x1xf32>
    %267 = math.rsqrt %266 : vector<8x1xf32>
    %268 = vector.broadcast %267 : vector<8x1xf32> to vector<8x32xf32>
    %269 = arith.mulf %264, %268 : vector<8x32xf32>
    %270 = vector.broadcast %17 : vector<1x32xf32> to vector<8x32xf32>
    %271 = arith.mulf %269, %270 : vector<8x32xf32>
    %272 = vector.broadcast %18 : vector<1x32xf32> to vector<8x32xf32>
    %273 = arith.addf %271, %272 : vector<8x32xf32>
    %c0_90 = arith.constant 0 : index
    %c0_91 = arith.constant 0 : index
    %c0_92 = arith.constant 0 : index
    %274 = vector.load %arg12[%c0_90, %c0_91, %c0_92] : memref<1x8x32xf32, #tpu.memory_space<vmem>>, vector<1x8x32xf32>
    %275 = vector.shape_cast %274 : vector<1x8x32xf32> to vector<8x32xf32>
    %276 = vector.shape_cast %273 : vector<8x32xf32> to vector<1x8x32xf32>
    tpu.vector_store %arg12[%c0_90, %c0_91, %c0_92], %276 {strides = array<i32>} : memref<1x8x32xf32, #tpu.memory_space<vmem>>, vector<1x8x32xf32>,
    return
  }
  func.func @transform_0(%arg0: i32, %arg1: i32) -> (i32, i32, i32) {
    %c0_i32 = arith.constant 0 : i32
    %c0_i32_0 = arith.constant 0 : i32
    %c0_i32_1 = arith.constant 0 : i32
    return %arg0, %c0_i32, %c0_i32_0 : i32, i32, i32
  }
  func.func @transform_1(%arg0: i32, %arg1: i32) -> (i32, i32, i32) {
    %c0_i32 = arith.constant 0 : i32
    %c0_i32_0 = arith.constant 0 : i32
    %c0_i32_1 = arith.constant 0 : i32
    return %arg0, %c0_i32, %c0_i32_0 : i32, i32, i32
  }
  func.func @transform_2(%arg0: i32, %arg1: i32) -> (i32, i32) {
    %c0_i32 = arith.constant 0 : i32
    %c0_i32_0 = arith.constant 0 : i32
    %c0_i32_1 = arith.constant 0 : i32
    return %c0_i32, %c0_i32_0 : i32, i32
  }
  func.func @transform_3(%arg0: i32, %arg1: i32) -> (i32, i32) {
    %c0_i32 = arith.constant 0 : i32
    %c0_i32_0 = arith.constant 0 : i32
    %c0_i32_1 = arith.constant 0 : i32
    return %c0_i32, %c0_i32_0 : i32, i32
  }
  func.func @transform_4(%arg0: i32, %arg1: i32) -> (i32, i32, i32) {
    %c0_i32 = arith.constant 0 : i32
    %c0_i32_0 = arith.constant 0 : i32
    %c0_i32_1 = arith.constant 0 : i32
    return %arg1, %c0_i32, %c0_i32_0 : i32, i32, i32
  }
  func.func @transform_5(%arg0: i32, %arg1: i32) -> (i32, i32, i32) {
    %c0_i32 = arith.constant 0 : i32
    %c0_i32_0 = arith.constant 0 : i32
    %c0_i32_1 = arith.constant 0 : i32
    return %arg1, %c0_i32, %c0_i32_0 : i32, i32, i32
  }
  func.func @transform_6(%arg0: i32, %arg1: i32) -> (i32, i32, i32) {
    %c0_i32 = arith.constant 0 : i32
    %c0_i32_0 = arith.constant 0 : i32
    %c0_i32_1 = arith.constant 0 : i32
    return %arg1, %c0_i32, %c0_i32_0 : i32, i32, i32
  }
  func.func @transform_7(%arg0: i32, %arg1: i32) -> (i32, i32, i32) {
    %c0_i32 = arith.constant 0 : i32
    %c0_i32_0 = arith.constant 0 : i32
    %c0_i32_1 = arith.constant 0 : i32
    return %arg1, %c0_i32, %c0_i32_0 : i32, i32, i32
  }
  func.func @transform_8(%arg0: i32, %arg1: i32) -> (i32, i32, i32) {
    %c0_i32 = arith.constant 0 : i32
    %c0_i32_0 = arith.constant 0 : i32
    %c0_i32_1 = arith.constant 0 : i32
    return %arg1, %c0_i32, %c0_i32_0 : i32, i32, i32
  }
  func.func @transform_9(%arg0: i32, %arg1: i32) -> (i32, i32, i32) {
    %c0_i32 = arith.constant 0 : i32
    %c0_i32_0 = arith.constant 0 : i32
    %c0_i32_1 = arith.constant 0 : i32
    return %arg1, %c0_i32, %c0_i32_0 : i32, i32, i32
  }
  func.func @transform_10(%arg0: i32, %arg1: i32) -> (i32, i32, i32) {
    %c0_i32 = arith.constant 0 : i32
    %c0_i32_0 = arith.constant 0 : i32
    %c0_i32_1 = arith.constant 0 : i32
    return %arg0, %c0_i32, %c0_i32_0 : i32, i32, i32
  }
}

</mosaic_0001>

<llo_original>
// kernel: decoder_forward.1
$region0: #{decoder_forward.1}
  #allocation0 [shape = 'u32[]', space=smem, size = 0x4, offset = 0x4, fixed_abs, tag = 'smem constant byte address 0x4 - core index']
  #allocation1 [shape = 'u32[72,128]{1,0:T(1,128)}', space=vmem, size = 0x9000, scoped, tag = 'internal scratch']
  %s0 = inlined_call_operand.vmem [shape: f32[2,8,32], index: 0, kind: input, shape index: {}]
  %s1 = inlined_call_operand.vmem [shape: f32[2,8,32], index: 1, kind: input, shape index: {}]
  %s2 = inlined_call_operand.vmem [shape: f32[8,8], index: 2, kind: input, shape index: {}]
  %s3 = inlined_call_operand.vmem [shape: f32[8,8], index: 3, kind: input, shape index: {}]
  %s4 = inlined_call_operand.vmem [shape: f32[2,32,96], index: 4, kind: input, shape index: {}]
  %s5 = inlined_call_operand.vmem [shape: f32[2,32,32], index: 5, kind: input, shape index: {}]
  %s6 = inlined_call_operand.vmem [shape: f32[2,32,128], index: 6, kind: input, shape index: {}]
  %s7 = inlined_call_operand.vmem [shape: f32[2,1,128], index: 7, kind: input, shape index: {}]
  %s8 = inlined_call_operand.vmem [shape: f32[2,128,32], index: 8, kind: input, shape index: {}]
  %s9 = inlined_call_operand.vmem [shape: f32[2,8,32], index: 9, kind: input, shape index: {}]
  %s10 = inlined_call_operand.hbm [shape: f32[2,8,32], index: 10, kind: output, shape index: {}]
  %s11 = sld [smem:[#allocation0]]
  $region77: #{decoder_forward.1} parent=0
    _
  %s13 = ssub.s32 1, %s11
  %s14 = scalar_select 0, %s13, %s11
  $region1: #{decoder_forward.1} parent=0
    #allocation2 [shape = 'u8[8192]{0}', space=vmem, size = 0x2000, scoped, tag = 'output window, operand 0']
    #allocation3 [shape = 's32[2]{0}', space=sflag, size = 0x8, scoped, tag = 'scoped memory for decoder_forward.1']
    %15 = vsyncpa [#allocation3], 0
    %s16 = scalar_lea.sflag [#allocation3], 1
    %17 = vsyncpa %s16, 0
    loop: start=0, step=1, limit=6
    $region2: #{decoder_forward.1} parent=1 // loop_pre_header
      _
    $region3: #{decoder_forward.1} parent=1 // loop_header
      %s19 = sphi 0, %s23
      %p20 = scmp.ge.s32.totalorder %s19, 6
      %s26 = sphi 0, %s38
      %s27 = sphi 0, %s34
      %s28 = sphi 0, %s26
      %s29 = sphi 0, %s27
      %s30 = sphi 0, %s28
      %s31 = sphi 0, %s29
      %s41 = sphi 0, %s43
      %s44 = sphi 0, %s41
      %s45 = sphi 0, %s44
      %s61 = sphi 0, %s45
      %s67 = sphi 0, %s69
      %s70 = sphi 0, %s67
      %s71 = sphi 0, %s70
      %s87 = sphi 0, %s71
      %s91 = sphi 0, %s91
      %s93 = sphi 0, %s91
      %s94 = sphi 0, %s93
      %s108 = sphi 0, %s94
      %s112 = sphi 0, %s112
      %s114 = sphi 0, %s112
      %s115 = sphi 0, %s114
      %s129 = sphi 0, %s115
      %s135 = sphi 0, %s137
      %s138 = sphi 0, %s135
      %s139 = sphi 0, %s138
      %s155 = sphi 0, %s139
      %s161 = sphi 0, %s163
      %s164 = sphi 0, %s161
      %s165 = sphi 0, %s164
      %s181 = sphi 0, %s165
      %s187 = sphi 0, %s189
      %s190 = sphi 0, %s187
      %s191 = sphi 0, %s190
      %s207 = sphi 0, %s191
      %s213 = sphi 0, %s215
      %s216 = sphi 0, %s213
      %s217 = sphi 0, %s216
      %s233 = sphi 0, %s217
      %s239 = sphi 0, %s241
      %s242 = sphi 0, %s239
      %s243 = sphi 0, %s242
      %s259 = sphi 0, %s243
      %s265 = sphi 0, %s267
      %s268 = sphi 0, %s265
      %s269 = sphi 0, %s268
      %s285 = sphi 0, %s269
      %s291 = sphi 0, %s293
      %s294 = sphi 0, %s291
      %s295 = sphi 0, %s294
      %s311 = sphi 0, %s295
    $region4: #{decoder_forward.1} parent=1 // loop_header_branch
      %22 = sbr.rel (%p20) target = $region8
    $region5: #{decoder_forward.1} parent=1 // loop_body
      %s24 = ssub.s32 %s19, 1
      %s25 = ssub.s32 %s19, 2
      %s32 = sadd.s32 1, %s27
      %p33 = scmp.ge.s32.totalorder %s32, 2
      %s34 = scalar_select %p33, 0, %s32
      %s35 = sadd.s32 1, %s26
      %s36 = scalar_select %p33, %s35, %s26
      %p37 = scmp.ge.s32.totalorder %s36, 2
      %s38 = scalar_select %p37, 0, %s36
      %s39 = ssub.s32 %s26, %s38
      %p40 = scmp.eq.s32.totalorder %s39, 0
      %s42 = sadd.s32 %s41, 1
      %s43 = scalar_select %p40, %s41, %s42
      %p46 = pneg %p40
      %p47 = scmp.eq.s32.totalorder %s19, 3
      %p48 = por %p46, %p47
      %p49 = scmp.ne.s32.totalorder %s41, %s44
      %p50 = scmp.eq.s32.totalorder %s19, 0
      %p51 = por %p49, %p50
      %p52 = scmp.ne.s32.totalorder %s41, %s44
      %p53 = scmp.eq.s32.totalorder %s24, 3
      %p54 = por %p52, %p53
      %p55 = scmp.ne.s32.totalorder %s44, %s45
      %p56 = scmp.eq.s32.totalorder %s24, 0
      %p57 = por %p55, %p56
      %p58 = scmp.ne.s32.totalorder %s44, %s45
      %p59 = scmp.eq.s32.totalorder %s25, 3
      %p60 = por %p58, %p59
      %p62 = scmp.ne.s32.totalorder %s45, %s61
      %p63 = scmp.eq.s32.totalorder %s25, 0
      %p64 = por %p62, %p63
      %s65 = ssub.s32 %s26, %s38
      %p66 = scmp.eq.s32.totalorder %s65, 0
      %s68 = sadd.s32 %s67, 1
      %s69 = scalar_select %p66, %s67, %s68
      %p72 = pneg %p66
      %p73 = scmp.eq.s32.totalorder %s19, 3
      %p74 = por %p72, %p73
      %p75 = scmp.ne.s32.totalorder %s67, %s70
      %p76 = scmp.eq.s32.totalorder %s19, 0
      %p77 = por %p75, %p76
      %p78 = scmp.ne.s32.totalorder %s67, %s70
      %p79 = scmp.eq.s32.totalorder %s24, 3
      %p80 = por %p78, %p79
      %p81 = scmp.ne.s32.totalorder %s70, %s71
      %p82 = scmp.eq.s32.totalorder %s24, 0
      %p83 = por %p81, %p82
      %p84 = scmp.ne.s32.totalorder %s70, %s71
      %p85 = scmp.eq.s32.totalorder %s25, 3
      %p86 = por %p84, %p85
      %p88 = scmp.ne.s32.totalorder %s71, %s87
      %p89 = scmp.eq.s32.totalorder %s25, 0
      %p90 = por %p88, %p89
      %s92 = sadd.s32 %s91, 1
      %p95 = scmp.eq.s32.totalorder %s19, 3
      %p96 = scmp.ne.s32.totalorder %s91, %s93
      %p97 = scmp.eq.s32.totalorder %s19, 0
      %p98 = por %p96, %p97
      %p99 = scmp.ne.s32.totalorder %s91, %s93
      %p100 = scmp.eq.s32.totalorder %s24, 3
      %p101 = por %p99, %p100
      %p102 = scmp.ne.s32.totalorder %s93, %s94
      %p103 = scmp.eq.s32.totalorder %s24, 0
      %p104 = por %p102, %p103
      %p105 = scmp.ne.s32.totalorder %s93, %s94
      %p106 = scmp.eq.s32.totalorder %s25, 3
      %p107 = por %p105, %p106
      %p109 = scmp.ne.s32.totalorder %s94, %s108
      %p110 = scmp.eq.s32.totalorder %s25, 0
      %p111 = por %p109, %p110
      %s113 = sadd.s32 %s112, 1
      %p116 = scmp.eq.s32.totalorder %s19, 3
      %p117 = scmp.ne.s32.totalorder %s112, %s114
      %p118 = scmp.eq.s32.totalorder %s19, 0
      %p119 = por %p117, %p118
      %p120 = scmp.ne.s32.totalorder %s112, %s114
      %p121 = scmp.eq.s32.totalorder %s24, 3
      %p122 = por %p120, %p121
      %p123 = scmp.ne.s32.totalorder %s114, %s115
      %p124 = scmp.eq.s32.totalorder %s24, 0
      %p125 = por %p123, %p124
      %p126 = scmp.ne.s32.totalorder %s114, %s115
      %p127 = scmp.eq.s32.totalorder %s25, 3
      %p128 = por %p126, %p127
      %p130 = scmp.ne.s32.totalorder %s115, %s129
      %p131 = scmp.eq.s32.totalorder %s25, 0
      %p132 = por %p130, %p131
      %s133 = ssub.s32 %s27, %s34
      %p134 = scmp.eq.s32.totalorder %s133, 0
      %s136 = sadd.s32 %s135, 1
      %s137 = scalar_select %p134, %s135, %s136
      %p140 = pneg %p134
      %p141 = scmp.eq.s32.totalorder %s19, 3
      %p142 = por %p140, %p141
      %p143 = scmp.ne.s32.totalorder %s135, %s138
      %p144 = scmp.eq.s32.totalorder %s19, 0
      %p145 = por %p143, %p144
      %p146 = scmp.ne.s32.totalorder %s135, %s138
      %p147 = scmp.eq.s32.totalorder %s24, 3
      %p148 = por %p146, %p147
      %p149 = scmp.ne.s32.totalorder %s138, %s139
      %p150 = scmp.eq.s32.totalorder %s24, 0
      %p151 = por %p149, %p150
      %p152 = scmp.ne.s32.totalorder %s138, %s139
      %p153 = scmp.eq.s32.totalorder %s25, 3
      %p154 = por %p152, %p153
      %p156 = scmp.ne.s32.totalorder %s139, %s155
      %p157 = scmp.eq.s32.totalorder %s25, 0
      %p158 = por %p156, %p157
      %s159 = ssub.s32 %s27, %s34
      %p160 = scmp.eq.s32.totalorder %s159, 0
      %s162 = sadd.s32 %s161, 1
      %s163 = scalar_select %p160, %s161, %s162
      %p166 = pneg %p160
      %p167 = scmp.eq.s32.totalorder %s19, 3
      %p168 = por %p166, %p167
      %p169 = scmp.ne.s32.totalorder %s161, %s164
      %p170 = scmp.eq.s32.totalorder %s19, 0
      %p171 = por %p169, %p170
      %p172 = scmp.ne.s32.totalorder %s161, %s164
      %p173 = scmp.eq.s32.totalorder %s24, 3
      %p174 = por %p172, %p173
      %p175 = scmp.ne.s32.totalorder %s164, %s165
      %p176 = scmp.eq.s32.totalorder %s24, 0
      %p177 = por %p175, %p176
      %p178 = scmp.ne.s32.totalorder %s164, %s165
      %p179 = scmp.eq.s32.totalorder %s25, 3
      %p180 = por %p178, %p179
      %p182 = scmp.ne.s32.totalorder %s165, %s181
      %p183 = scmp.eq.s32.totalorder %s25, 0
      %p184 = por %p182, %p183
      %s185 = ssub.s32 %s27, %s34
      %p186 = scmp.eq.s32.totalorder %s185, 0
      %s188 = sadd.s32 %s187, 1
      %s189 = scalar_select %p186, %s187, %s188
      %p192 = pneg %p186
      %p193 = scmp.eq.s32.totalorder %s19, 3
      %p194 = por %p192, %p193
      %p195 = scmp.ne.s32.totalorder %s187, %s190
      %p196 = scmp.eq.s32.totalorder %s19, 0
      %p197 = por %p195, %p196
      %p198 = scmp.ne.s32.totalorder %s187, %s190
      %p199 = scmp.eq.s32.totalorder %s24, 3
      %p200 = por %p198, %p199
      %p201 = scmp.ne.s32.totalorder %s190, %s191
      %p202 = scmp.eq.s32.totalorder %s24, 0
      %p203 = por %p201, %p202
      %p204 = scmp.ne.s32.totalorder %s190, %s191
      %p205 = scmp.eq.s32.totalorder %s25, 3
      %p206 = por %p204, %p205
      %p208 = scmp.ne.s32.totalorder %s191, %s207
      %p209 = scmp.eq.s32.totalorder %s25, 0
      %p210 = por %p208, %p209
      %s211 = ssub.s32 %s27, %s34
      %p212 = scmp.eq.s32.totalorder %s211, 0
      %s214 = sadd.s32 %s213, 1
      %s215 = scalar_select %p212, %s213, %s214
      %p218 = pneg %p212
      %p219 = scmp.eq.s32.totalorder %s19, 3
      %p220 = por %p218, %p219
      %p221 = scmp.ne.s32.totalorder %s213, %s216
      %p222 = scmp.eq.s32.totalorder %s19, 0
      %p223 = por %p221, %p222
      %p224 = scmp.ne.s32.totalorder %s213, %s216
      %p225 = scmp.eq.s32.totalorder %s24, 3
      %p226 = por %p224, %p225
      %p227 = scmp.ne.s32.totalorder %s216, %s217
      %p228 = scmp.eq.s32.totalorder %s24, 0
      %p229 = por %p227, %p228
      %p230 = scmp.ne.s32.totalorder %s216, %s217
      %p231 = scmp.eq.s32.totalorder %s25, 3
      %p232 = por %p230, %p231
      %p234 = scmp.ne.s32.totalorder %s217, %s233
      %p235 = scmp.eq.s32.totalorder %s25, 0
      %p236 = por %p234, %p235
      %s237 = ssub.s32 %s27, %s34
      %p238 = scmp.eq.s32.totalorder %s237, 0
      %s240 = sadd.s32 %s239, 1
      %s241 = scalar_select %p238, %s239, %s240
      %p244 = pneg %p238
      %p245 = scmp.eq.s32.totalorder %s19, 3
      %p246 = por %p244, %p245
      %p247 = scmp.ne.s32.totalorder %s239, %s242
      %p248 = scmp.eq.s32.totalorder %s19, 0
      %p249 = por %p247, %p248
      %p250 = scmp.ne.s32.totalorder %s239, %s242
      %p251 = scmp.eq.s32.totalorder %s24, 3
      %p252 = por %p250, %p251
      %p253 = scmp.ne.s32.totalorder %s242, %s243
      %p254 = scmp.eq.s32.totalorder %s24, 0
      %p255 = por %p253, %p254
      %p256 = scmp.ne.s32.totalorder %s242, %s243
      %p257 = scmp.eq.s32.totalorder %s25, 3
      %p258 = por %p256, %p257
      %p260 = scmp.ne.s32.totalorder %s243, %s259
      %p261 = scmp.eq.s32.totalorder %s25, 0
      %p262 = por %p260, %p261
      %s263 = ssub.s32 %s27, %s34
      %p264 = scmp.eq.s32.totalorder %s263, 0
      %s266 = sadd.s32 %s265, 1
      %s267 = scalar_select %p264, %s265, %s266
      %p270 = pneg %p264
      %p271 = scmp.eq.s32.totalorder %s19, 3
      %p272 = por %p270, %p271
      %p273 = scmp.ne.s32.totalorder %s265, %s268
      %p274 = scmp.eq.s32.totalorder %s19, 0
      %p275 = por %p273, %p274
      %p276 = scmp.ne.s32.totalorder %s265, %s268
      %p277 = scmp.eq.s32.totalorder %s24, 3
      %p278 = por %p276, %p277
      %p279 = scmp.ne.s32.totalorder %s268, %s269
      %p280 = scmp.eq.s32.totalorder %s24, 0
      %p281 = por %p279, %p280
      %p282 = scmp.ne.s32.totalorder %s268, %s269
      %p283 = scmp.eq.s32.totalorder %s25, 3
      %p284 = por %p282, %p283
      %p286 = scmp.ne.s32.totalorder %s269, %s285
      %p287 = scmp.eq.s32.totalorder %s25, 0
      %p288 = por %p286, %p287
      %s289 = ssub.s32 %s26, %s38
      %p290 = scmp.eq.s32.totalorder %s289, 0
      %s292 = sadd.s32 %s291, 1
      %s293 = scalar_select %p290, %s291, %s292
      %p296 = pneg %p290
      %p297 = scmp.eq.s32.totalorder %s19, 3
      %p298 = por %p296, %p297
      %p299 = scmp.ne.s32.totalorder %s291, %s294
      %p300 = scmp.eq.s32.totalorder %s19, 0
      %p301 = por %p299, %p300
      %p302 = scmp.ne.s32.totalorder %s291, %s294
      %p303 = scmp.eq.s32.totalorder %s24, 3
      %p304 = por %p302, %p303
      %p305 = scmp.ne.s32.totalorder %s294, %s295
      %p306 = scmp.eq.s32.totalorder %s24, 0
      %p307 = por %p305, %p306
      %p308 = scmp.ne.s32.totalorder %s294, %s295
      %p309 = scmp.eq.s32.totalorder %s25, 3
      %p310 = por %p308, %p309
      %p312 = scmp.ne.s32.totalorder %s295, %s311
      %p313 = scmp.eq.s32.totalorder %s25, 0
      %p314 = por %p312, %p313
      %p315 = scmp.le.s32.totalorder 1, %s19
      %p316 = scmp.lt.s32.totalorder %s19, 5
      %p317 = pnand %p315, %p316
      %p318 = pneg %p317
      // Predicated region
      $region9: #{decoder_forward.1} parent=5 // pred_check
        _
      $region10: #{decoder_forward.1} parent=5 // pred_check_branch
        %320 = sbr.rel (%p317) target = $region12
      $region11: #{decoder_forward.1} parent=5 // pred_region
        %s321 = ssub.s32 %s19, 1
        // Predicated region
        $region13: #{decoder_forward.1} parent=11 // pred_check
          %p322 = pneg %p104
        $region14: #{decoder_forward.1} parent=11 // pred_check_branch
          %324 = sbr.rel (%p322) target = $region16
        $region15: #{decoder_forward.1} parent=11 // pred_region
          _
        $region16: #{decoder_forward.1} parent=11 // pred_fallthru
          _
        // Predicated region
        $region17: #{decoder_forward.1} parent=11 // pred_check
          %p325 = pneg %p125
        $region18: #{decoder_forward.1} parent=11 // pred_check_branch
          %327 = sbr.rel (%p325) target = $region20
        $region19: #{decoder_forward.1} parent=11 // pred_region
          _
        $region20: #{decoder_forward.1} parent=11 // pred_fallthru
          _
      $region12: #{decoder_forward.1} parent=5 // pred_fallthru
        _
      %p328 = scmp.lt.s32.totalorder %s19, 4
      // Predicated region
      $region21: #{decoder_forward.1} parent=5 // pred_check
        %p329 = pneg %p328
      $region22: #{decoder_forward.1} parent=5 // pred_check_branch
        %331 = sbr.rel (%p329) target = $region24
      $region23: #{decoder_forward.1} parent=5 // pred_region
        // Predicated region
        $region25: #{decoder_forward.1} parent=23 // pred_check
          %p332 = pneg %p51
        $region26: #{decoder_forward.1} parent=23 // pred_check_branch
          %334 = sbr.rel (%p332) target = $region28
        $region27: #{decoder_forward.1} parent=23 // pred_region
          %p335 = scmp.lt.s32.totalorder %s26, 1
          %s336 = scalar_select %p335, %s26, 1
          %s337 = smul.addr %s336, 8
          %s338 = scalar_lea.vmem %s0, %s337
        $region28: #{decoder_forward.1} parent=23 // pred_fallthru
          _
        // Predicated region
        $region29: #{decoder_forward.1} parent=23 // pred_check
          %p339 = pneg %p77
        $region30: #{decoder_forward.1} parent=23 // pred_check_branch
          %341 = sbr.rel (%p339) target = $region32
        $region31: #{decoder_forward.1} parent=23 // pred_region
          %p342 = scmp.lt.s32.totalorder %s26, 1
          %s343 = scalar_select %p342, %s26, 1
          %s344 = smul.addr %s343, 8
          %s345 = scalar_lea.vmem %s1, %s344
        $region32: #{decoder_forward.1} parent=23 // pred_fallthru
          _
        // Predicated region
        $region33: #{decoder_forward.1} parent=23 // pred_check
          %p346 = pneg %p145
        $region34: #{decoder_forward.1} parent=23 // pred_check_branch
          %348 = sbr.rel (%p346) target = $region36
        $region35: #{decoder_forward.1} parent=23 // pred_region
          %p349 = scmp.lt.s32.totalorder %s27, 1
          %s350 = scalar_select %p349, %s27, 1
          %s351 = smul.addr %s350, 4
          %s352 = smul.addr %s351, 8
          %s353 = scalar_lea.vmem %s4, %s352
        $region36: #{decoder_forward.1} parent=23 // pred_fallthru
          _
        // Predicated region
        $region37: #{decoder_forward.1} parent=23 // pred_check
          %p354 = pneg %p171
        $region38: #{decoder_forward.1} parent=23 // pred_check_branch
          %356 = sbr.rel (%p354) target = $region40
        $region39: #{decoder_forward.1} parent=23 // pred_region
          %p357 = scmp.lt.s32.totalorder %s27, 1
          %s358 = scalar_select %p357, %s27, 1
          %s359 = smul.addr %s358, 4
          %s360 = smul.addr %s359, 8
          %s361 = scalar_lea.vmem %s5, %s360
        $region40: #{decoder_forward.1} parent=23 // pred_fallthru
          _
        // Predicated region
        $region41: #{decoder_forward.1} parent=23 // pred_check
          %p362 = pneg %p197
        $region42: #{decoder_forward.1} parent=23 // pred_check_branch
          %364 = sbr.rel (%p362) target = $region44
        $region43: #{decoder_forward.1} parent=23 // pred_region
          %p365 = scmp.lt.s32.totalorder %s27, 1
          %s366 = scalar_select %p365, %s27, 1
          %s367 = smul.addr %s366, 4
          %s368 = smul.addr %s367, 8
          %s369 = scalar_lea.vmem %s6, %s368
        $region44: #{decoder_forward.1} parent=23 // pred_fallthru
          _
        // Predicated region
        $region45: #{decoder_forward.1} parent=23 // pred_check
          %p370 = pneg %p223
        $region46: #{decoder_forward.1} parent=23 // pred_check_branch
          %372 = sbr.rel (%p370) target = $region48
        $region47: #{decoder_forward.1} parent=23 // pred_region
          %p373 = scmp.lt.s32.totalorder %s27, 1
          %s374 = scalar_select %p373, %s27, 1
          %s375 = scalar_lea.vmem %s7, %s374
        $region48: #{decoder_forward.1} parent=23 // pred_fallthru
          _
        // Predicated region
        $region49: #{decoder_forward.1} parent=23 // pred_check
          %p376 = pneg %p249
        $region50: #{decoder_forward.1} parent=23 // pred_check_branch
          %378 = sbr.rel (%p376) target = $region52
        $region51: #{decoder_forward.1} parent=23 // pred_region
          %p379 = scmp.lt.s32.totalorder %s27, 1
          %s380 = scalar_select %p379, %s27, 1
          %s381 = smul.addr %s380, 16
          %s382 = smul.addr %s381, 8
          %s383 = scalar_lea.vmem %s8, %s382
        $region52: #{decoder_forward.1} parent=23 // pred_fallthru
          _
        // Predicated region
        $region53: #{decoder_forward.1} parent=23 // pred_check
          %p384 = pneg %p275
        $region54: #{decoder_forward.1} parent=23 // pred_check_branch
          %386 = sbr.rel (%p384) target = $region56
        $region55: #{decoder_forward.1} parent=23 // pred_region
          %p387 = scmp.lt.s32.totalorder %s27, 1
          %s388 = scalar_select %p387, %s27, 1
          %s389 = smul.addr %s388, 8
          %s390 = scalar_lea.vmem %s9, %s389
        $region56: #{decoder_forward.1} parent=23 // pred_fallthru
          _
      $region24: #{decoder_forward.1} parent=5 // pred_fallthru
        _
      %p391 = scmp.le.s32.totalorder 1, %s19
      %p392 = scmp.lt.s32.totalorder %s19, 5
      %p393 = pnand %p391, %p392
      %p394 = pneg %p393
      // Predicated region
      $region57: #{decoder_forward.1} parent=5 // pred_check
        _
      $region58: #{decoder_forward.1} parent=5 // pred_check_branch
        %396 = sbr.rel (%p393) target = $region60
      $region59: #{decoder_forward.1} parent=5 // pred_region
        %s397 = ssub.s32 %s19, 1
        %p398 = scmp.lt.s32.totalorder %s28, 1
        %s399 = scalar_select %p398, %s28, 1
        %s400 = smul.addr %s399, 8
        %s401 = scalar_lea.vmem %s0, %s400
        %p402 = pneg %p57
        %p403 = pneg %p54
        %p404 = scmp.lt.s32.totalorder %s28, 1
        %s405 = scalar_select %p404, %s28, 1
        %s406 = smul.addr %s405, 8
        %s407 = scalar_lea.vmem %s1, %s406
        %p408 = pneg %p83
        %p409 = pneg %p80
        %p410 = pneg %p104
        %p411 = pneg %p101
        %p412 = pneg %p125
        %p413 = pneg %p122
        %p414 = scmp.lt.s32.totalorder %s29, 1
        %s415 = scalar_select %p414, %s29, 1
        %s416 = smul.addr %s415, 4
        %s417 = smul.addr %s416, 8
        %s418 = scalar_lea.vmem %s4, %s417
        %p419 = pneg %p151
        %p420 = pneg %p148
        %p421 = scmp.lt.s32.totalorder %s29, 1
        %s422 = scalar_select %p421, %s29, 1
        %s423 = smul.addr %s422, 4
        %s424 = smul.addr %s423, 8
        %s425 = scalar_lea.vmem %s5, %s424
        %p426 = pneg %p177
        %p427 = pneg %p174
        %p428 = scmp.lt.s32.totalorder %s29, 1
        %s429 = scalar_select %p428, %s29, 1
        %s430 = smul.addr %s429, 4
        %s431 = smul.addr %s430, 8
        %s432 = scalar_lea.vmem %s6, %s431
        %p433 = pneg %p203
        %p434 = pneg %p200
        %p435 = scmp.lt.s32.totalorder %s29, 1
        %s436 = scalar_select %p435, %s29, 1
        %s437 = scalar_lea.vmem %s7, %s436
        %p438 = pneg %p229
        %p439 = pneg %p226
        %p440 = scmp.lt.s32.totalorder %s29, 1
        %s441 = scalar_select %p440, %s29, 1
        %s442 = smul.addr %s441, 16
        %s443 = smul.addr %s442, 8
        %s444 = scalar_lea.vmem %s8, %s443
        %p445 = pneg %p255
        %p446 = pneg %p252
        %p447 = scmp.lt.s32.totalorder %s29, 1
        %s448 = scalar_select %p447, %s29, 1
        %s449 = smul.addr %s448, 8
        %s450 = scalar_lea.vmem %s9, %s449
        %p451 = pneg %p281
        %p452 = pneg %p278
        %p453 = pneg %p307
        %p454 = pneg %p304
        %s455 = sand.u32 %s294, 1
        %s456 = scalar_lea.sflag [#allocation3], %s455
        %s457 = sand.u32 %s294, 1
        %s458 = smul.addr %s457, 8
        %s459 = scalar_lea.vmem [#allocation2], %s458
        %p460 = scmp.lt.s32.totalorder %s28, 1
        %s461 = scalar_select %p460, %s28, 1
        %s462 = smul.addr %s461, 8
        %s463 = scalar_lea.vmem %s0, %s462
        %p464 = scmp.lt.s32.totalorder %s28, 1
        %s465 = scalar_select %p464, %s28, 1
        %s466 = smul.addr %s465, 8
        %s467 = scalar_lea.vmem %s1, %s466
        %p468 = scmp.lt.s32.totalorder %s29, 1
        %s469 = scalar_select %p468, %s29, 1
        %s470 = smul.addr %s469, 4
        %s471 = smul.addr %s470, 8
        %s472 = scalar_lea.vmem %s4, %s471
        %p473 = scmp.lt.s32.totalorder %s29, 1
        %s474 = scalar_select %p473, %s29, 1
        %s475 = smul.addr %s474, 4
        %s476 = smul.addr %s475, 8
        %s477 = scalar_lea.vmem %s5, %s476
        %p478 = scmp.lt.s32.totalorder %s29, 1
        %s479 = scalar_select %p478, %s29, 1
        %s480 = smul.addr %s479, 4
        %s481 = smul.addr %s480, 8
        %s482 = scalar_lea.vmem %s6, %s481
        %p483 = scmp.lt.s32.totalorder %s29, 1
        %s484 = scalar_select %p483, %s29, 1
        %s485 = scalar_lea.vmem %s7, %s484
        %p486 = scmp.lt.s32.totalorder %s29, 1
        %s487 = scalar_select %p486, %s29, 1
        %s488 = smul.addr %s487, 16
        %s489 = smul.addr %s488, 8
        %s490 = scalar_lea.vmem %s8, %s489
        %p491 = scmp.lt.s32.totalorder %s29, 1
        %s492 = scalar_select %p491, %s29, 1
        %s493 = smul.addr %s492, 8
        %s494 = scalar_lea.vmem %s9, %s493
        %p495 = scmp.eq.s32.totalorder %s29, 0
        // Predicated region
        $region61: #{decoder_forward.1} parent=59 // pred_check
          %p496 = pneg %p495
        $region62: #{decoder_forward.1} parent=59 // pred_check_branch
          %498 = sbr.rel (%p496) target = $region64
        $region63: #{decoder_forward.1} parent=59 // pred_region
          %v499 = vld [vmem:[%s463] sm:$0xff]
          %vm500 = vcmask 261120
          %501 = vst.msk [vmem:[%s459] sm:$0xff] %vm500, %v499
        $region64: #{decoder_forward.1} parent=59 // pred_fallthru
          _
        %v502 = vld [vmem:[%s459] sm:$0xff]
        %v503 = vld [vmem:[%s467] sm:$0xff]
        %v504 = vld [vmem:[%s472] sm:$0xff]
        %v505 = vld [vmem:[%s472 + $0x8] sm:$0xff]
        %v506 = vld [vmem:[%s472 + $0x10] sm:$0xff]
        %v507 = vld [vmem:[%s472 + $0x18] sm:$0xff]
        %v508 = vld [vmem:[%s477] sm:$0xff]
        %v509 = vld [vmem:[%s477 + $0x8] sm:$0xff]
        %v510 = vld [vmem:[%s477 + $0x10] sm:$0xff]
        %v511 = vld [vmem:[%s477 + $0x18] sm:$0xff]
        %v512 = vld [vmem:[%s494] sm:$0xff]
        %v513 = vld [vmem:[%s2] sm:$0xff]
        %vm514 = vcmask 261120
        %v516 = vsel %vm514, %v502, 0
        %518 = vmatpush.msra.mxu0 0.0
        %519 = vmatpush.msra.mxu0 0.0
        %520 = vmatpush.msra.mxu0 0.0
        %521 = vmatpush.msra.mxu0 0.0
        %522 = vmatpush.msra.mxu0 0.0
        %523 = vmatpush.msra.mxu0 0.0
        %524 = vmatpush.msra.mxu0 0.0
        %525 = vmatpush.msra.mxu0 0.0
        %526 = vmatpush.msra.mxu0 0.0
        %527 = vmatpush.msra.mxu0 0.0
        %528 = vmatpush.msra.mxu0 0.0
        %529 = vmatpush.msra.mxu0 0.0
        %530 = vmatpush.msra.mxu0 %v507
        %531 = vmatpush.msra.mxu0 %v506
        %532 = vmatpush.msra.mxu0 %v505
        %533 = vmatpush.msra.mxu0 %v504
        %534 = vmatmul.f32.gmra.mxu0 %v516
        %v535 = vpop.f32.mrf.mxu0
        %v536 = vadd.f32 0.0, %v535
        %537 = vdwg.mxu0
        %539 = vrot.lane.b32.xlu0 %v536, 96
        %v540 = vpop.permute.xlu0 %539
        %vm541 = vcmask 64512
        %v542 = vsel %vm541, %v536, 0
        %v544 = vsel %vm541, %v540, 0
        %546 = vmatpush.xpose.msra.mxu0 0.0
        %547 = vmatpush.xpose.msra.mxu0 0.0
        %548 = vmatpush.xpose.msra.mxu0 0.0
        %549 = vmatpush.xpose.msra.mxu0 0.0
        %550 = vmatpush.xpose.msra.mxu0 0.0
        %551 = vmatpush.xpose.msra.mxu0 0.0
        %552 = vmatpush.xpose.msra.mxu0 0.0
        %553 = vmatpush.xpose.msra.mxu0 0.0
        %554 = vmatpush.xpose.msra.mxu0 0.0
        %555 = vmatpush.xpose.msra.mxu0 0.0
        %556 = vmatpush.xpose.msra.mxu0 0.0
        %557 = vmatpush.xpose.msra.mxu0 0.0
        %558 = vmatpush.xpose.msra.mxu0 0.0
        %559 = vmatpush.xpose.msra.mxu0 0.0
        %560 = vmatpush.xpose.msra.mxu0 0.0
        %561 = vmatpush.xpose.msra.mxu0 %v544
        %562 = vmatmul.f32.gmra.mxu0 %v542
        %v563 = vpop.f32.mrf.mxu0
        %v564 = vadd.f32 %v513, %v563
        %565 = vdwg.mxu0
        %v566 = vsel %vm541, %v564, -inf
        %567 = vmax.xlane.f32.xlu0 %v566
        %v568 = vpop.xlane.xlu0 %567
        %v569 = vsub.f32 %v564, %v568
        %v570 = vmul.f32 %v569, 1.442695
        %v571 = vpow.pop %v570
        %v572 = vsel %vm541, %v571, 0.0
        %573 = vadd.xlane.f32.xlu0 %v572
        %v574 = vpop.xlane.xlu0 %573
        %v575 = vrcp.pop %v574
        %v576 = vmul.f32 %v571, %v575
        %577 = vrot.lane.b32.xlu0 %v536, 64
        %v578 = vpop.permute.xlu0 %577
        %v581 = vsel %vm541, %v576, 0
        %583 = vmatpush.msra.mxu0 0.0
        %584 = vmatpush.msra.mxu0 0.0
        %585 = vmatpush.msra.mxu0 0.0
        %586 = vmatpush.msra.mxu0 0.0
        %587 = vmatpush.msra.mxu0 0.0
        %588 = vmatpush.msra.mxu0 0.0
        %589 = vmatpush.msra.mxu0 0.0
        %590 = vmatpush.msra.mxu0 0.0
        %591 = vmatpush.msra.mxu0 0.0
        %592 = vmatpush.msra.mxu0 0.0
        %593 = vmatpush.msra.mxu0 0.0
        %594 = vmatpush.msra.mxu0 0.0
        %595 = vmatpush.msra.mxu0 0.0
        %596 = vmatpush.msra.mxu0 0.0
        %597 = vmatpush.msra.mxu0 0.0
        %598 = vmatpush.msra.mxu0 %v578
        %599 = vmatmul.f32.gmra.mxu0 %v581
        %v600 = vpop.f32.mrf.mxu0
        %v601 = vadd.f32 0.0, %v600
        %602 = vdwg.mxu0
        %603 = vrot.lane.b32.xlu0 %v536, 120
        %v604 = vpop.permute.xlu0 %603
        %605 = vrot.lane.b32.xlu0 %v536, 88
        %v606 = vpop.permute.xlu0 %605
        %v607 = vsel %vm541, %v604, 0
        %v609 = vsel %vm541, %v606, 0
        %611 = vmatpush.xpose.msra.mxu0 0.0
        %612 = vmatpush.xpose.msra.mxu0 0.0
        %613 = vmatpush.xpose.msra.mxu0 0.0
        %614 = vmatpush.xpose.msra.mxu0 0.0
        %615 = vmatpush.xpose.msra.mxu0 0.0
        %616 = vmatpush.xpose.msra.mxu0 0.0
        %617 = vmatpush.xpose.msra.mxu0 0.0
        %618 = vmatpush.xpose.msra.mxu0 0.0
        %619 = vmatpush.xpose.msra.mxu0 0.0
        %620 = vmatpush.xpose.msra.mxu0 0.0
        %621 = vmatpush.xpose.msra.mxu0 0.0
        %622 = vmatpush.xpose.msra.mxu0 0.0
        %623 = vmatpush.xpose.msra.mxu0 0.0
        %624 = vmatpush.xpose.msra.mxu0 0.0
        %625 = vmatpush.xpose.msra.mxu0 0.0
        %626 = vmatpush.xpose.msra.mxu0 %v609
        %627 = vmatmul.f32.gmra.mxu0 %v607
        %v628 = vpop.f32.mrf.mxu0
        %v629 = vadd.f32 %v513, %v628
        %630 = vdwg.mxu0
        %v631 = vsel %vm541, %v629, -inf
        %632 = vmax.xlane.f32.xlu0 %v631
        %v633 = vpop.xlane.xlu0 %632
        %v634 = vsub.f32 %v629, %v633
        %v635 = vmul.f32 %v634, 1.442695
        %v636 = vpow.pop %v635
        %v637 = vsel %vm541, %v636, 0.0
        %638 = vadd.xlane.f32.xlu0 %v637
        %v639 = vpop.xlane.xlu0 %638
        %v640 = vrcp.pop %v639
        %v641 = vmul.f32 %v636, %v640
        %642 = vrot.lane.b32.xlu0 %v536, 56
        %v643 = vpop.permute.xlu0 %642
        %v646 = vsel %vm541, %v641, 0
        %648 = vmatpush.msra.mxu0 0.0
        %649 = vmatpush.msra.mxu0 0.0
        %650 = vmatpush.msra.mxu0 0.0
        %651 = vmatpush.msra.mxu0 0.0
        %652 = vmatpush.msra.mxu0 0.0
        %653 = vmatpush.msra.mxu0 0.0
        %654 = vmatpush.msra.mxu0 0.0
        %655 = vmatpush.msra.mxu0 0.0
        %656 = vmatpush.msra.mxu0 0.0
        %657 = vmatpush.msra.mxu0 0.0
        %658 = vmatpush.msra.mxu0 0.0
        %659 = vmatpush.msra.mxu0 0.0
        %660 = vmatpush.msra.mxu0 0.0
        %661 = vmatpush.msra.mxu0 0.0
        %662 = vmatpush.msra.mxu0 0.0
        %663 = vmatpush.msra.mxu0 %v643
        %664 = vmatmul.f32.gmra.mxu0 %v646
        %v665 = vpop.f32.mrf.mxu0
        %v666 = vadd.f32 0.0, %v665
        %667 = vdwg.mxu0
        %v669 = vsel %vm541, %v666, 0
        %671 = vmatpush.msra.mxu0 0.0
        %672 = vmatpush.msra.mxu0 0.0
        %673 = vmatpush.msra.mxu0 0.0
        %674 = vmatpush.msra.mxu0 0.0
        %675 = vmatpush.msra.mxu0 0.0
        %676 = vmatpush.msra.mxu0 0.0
        %677 = vmatpush.msra.mxu0 0.0
        %678 = vmatpush.msra.mxu0 0.0
        %679 = vmatpush.msra.mxu0 0.0
        %680 = vmatpush.msra.mxu0 0.0
        %681 = vmatpush.msra.mxu0 0.0
        %682 = vmatpush.msra.mxu0 0.0
        %683 = vmatpush.msra.mxu0 0.0
        %684 = vmatpush.msra.mxu0 0.0
        %685 = vmatpush.msra.mxu0 0.0
        %686 = vmatpush.msra.mxu0 %v509
        %687 = vmatmul.f32.gmra.mxu0 %v669
        %v688 = vpop.f32.mrf.mxu0
        %v689 = vadd.f32 0.0, %v688
        %690 = vdwg.mxu0
        %v692 = vsel %vm541, %v601, 0
        %694 = vmatpush.msra.mxu0 0.0
        %695 = vmatpush.msra.mxu0 0.0
        %696 = vmatpush.msra.mxu0 0.0
        %697 = vmatpush.msra.mxu0 0.0
        %698 = vmatpush.msra.mxu0 0.0
        %699 = vmatpush.msra.mxu0 0.0
        %700 = vmatpush.msra.mxu0 0.0
        %701 = vmatpush.msra.mxu0 0.0
        %702 = vmatpush.msra.mxu0 0.0
        %703 = vmatpush.msra.mxu0 0.0
        %704 = vmatpush.msra.mxu0 0.0
        %705 = vmatpush.msra.mxu0 0.0
        %706 = vmatpush.msra.mxu0 0.0
        %707 = vmatpush.msra.mxu0 0.0
        %708 = vmatpush.msra.mxu0 0.0
        %709 = vmatpush.msra.mxu0 %v508
        %710 = vmatmul.f32.gmra.mxu0 %v692
        %v711 = vpop.f32.mrf.mxu0
        %v712 = vadd.f32 %v689, %v711
        %713 = vdwg.mxu0
        %714 = vrot.lane.b32.xlu0 %v536, 112
        %v715 = vpop.permute.xlu0 %714
        %716 = vrot.lane.b32.xlu0 %v536, 80
        %v717 = vpop.permute.xlu0 %716
        %v718 = vsel %vm541, %v715, 0
        %v720 = vsel %vm541, %v717, 0
        %722 = vmatpush.xpose.msra.mxu0 0.0
        %723 = vmatpush.xpose.msra.mxu0 0.0
        %724 = vmatpush.xpose.msra.mxu0 0.0
        %725 = vmatpush.xpose.msra.mxu0 0.0
        %726 = vmatpush.xpose.msra.mxu0 0.0
        %727 = vmatpush.xpose.msra.mxu0 0.0
        %728 = vmatpush.xpose.msra.mxu0 0.0
        %729 = vmatpush.xpose.msra.mxu0 0.0
        %730 = vmatpush.xpose.msra.mxu0 0.0
        %731 = vmatpush.xpose.msra.mxu0 0.0
        %732 = vmatpush.xpose.msra.mxu0 0.0
        %733 = vmatpush.xpose.msra.mxu0 0.0
        %734 = vmatpush.xpose.msra.mxu0 0.0
        %735 = vmatpush.xpose.msra.mxu0 0.0
        %736 = vmatpush.xpose.msra.mxu0 0.0
        %737 = vmatpush.xpose.msra.mxu0 %v720
        %738 = vmatmul.f32.gmra.mxu0 %v718
        %v739 = vpop.f32.mrf.mxu0
        %v740 = vadd.f32 %v513, %v739
        %741 = vdwg.mxu0
        %v742 = vsel %vm541, %v740, -inf
        %743 = vmax.xlane.f32.xlu0 %v742
        %v744 = vpop.xlane.xlu0 %743
        %v745 = vsub.f32 %v740, %v744
        %v746 = vmul.f32 %v745, 1.442695
        %v747 = vpow.pop %v746
        %v748 = vsel %vm541, %v747, 0.0
        %749 = vadd.xlane.f32.xlu0 %v748
        %v750 = vpop.xlane.xlu0 %749
        %v751 = vrcp.pop %v750
        %v752 = vmul.f32 %v747, %v751
        %753 = vrot.lane.b32.xlu0 %v536, 48
        %v754 = vpop.permute.xlu0 %753
        %v757 = vsel %vm541, %v752, 0
        %759 = vmatpush.msra.mxu0 0.0
        %760 = vmatpush.msra.mxu0 0.0
        %761 = vmatpush.msra.mxu0 0.0
        %762 = vmatpush.msra.mxu0 0.0
        %763 = vmatpush.msra.mxu0 0.0
        %764 = vmatpush.msra.mxu0 0.0
        %765 = vmatpush.msra.mxu0 0.0
        %766 = vmatpush.msra.mxu0 0.0
        %767 = vmatpush.msra.mxu0 0.0
        %768 = vmatpush.msra.mxu0 0.0
        %769 = vmatpush.msra.mxu0 0.0
        %770 = vmatpush.msra.mxu0 0.0
        %771 = vmatpush.msra.mxu0 0.0
        %772 = vmatpush.msra.mxu0 0.0
        %773 = vmatpush.msra.mxu0 0.0
        %774 = vmatpush.msra.mxu0 %v754
        %775 = vmatmul.f32.gmra.mxu0 %v757
        %v776 = vpop.f32.mrf.mxu0
        %v777 = vadd.f32 0.0, %v776
        %778 = vdwg.mxu0
        %v780 = vsel %vm541, %v777, 0
        %782 = vmatpush.msra.mxu0 0.0
        %783 = vmatpush.msra.mxu0 0.0
        %784 = vmatpush.msra.mxu0 0.0
        %785 = vmatpush.msra.mxu0 0.0
        %786 = vmatpush.msra.mxu0 0.0
        %787 = vmatpush.msra.mxu0 0.0
        %788 = vmatpush.msra.mxu0 0.0
        %789 = vmatpush.msra.mxu0 0.0
        %790 = vmatpush.msra.mxu0 0.0
        %791 = vmatpush.msra.mxu0 0.0
        %792 = vmatpush.msra.mxu0 0.0
        %793 = vmatpush.msra.mxu0 0.0
        %794 = vmatpush.msra.mxu0 0.0
        %795 = vmatpush.msra.mxu0 0.0
        %796 = vmatpush.msra.mxu0 0.0
        %797 = vmatpush.msra.mxu0 %v510
        %798 = vmatmul.f32.gmra.mxu0 %v780
        %v799 = vpop.f32.mrf.mxu0
        %v800 = vadd.f32 0.0, %v799
        %801 = vdwg.mxu0
        %v802 = vadd.f32 %v712, %v800
        %803 = vrot.lane.b32.xlu0 %v536, 104
        %v804 = vpop.permute.xlu0 %803
        %805 = vrot.lane.b32.xlu0 %v536, 72
        %v806 = vpop.permute.xlu0 %805
        %v807 = vsel %vm541, %v804, 0
        %v809 = vsel %vm541, %v806, 0
        %811 = vmatpush.xpose.msra.mxu0 0.0
        %812 = vmatpush.xpose.msra.mxu0 0.0
        %813 = vmatpush.xpose.msra.mxu0 0.0
        %814 = vmatpush.xpose.msra.mxu0 0.0
        %815 = vmatpush.xpose.msra.mxu0 0.0
        %816 = vmatpush.xpose.msra.mxu0 0.0
        %817 = vmatpush.xpose.msra.mxu0 0.0
        %818 = vmatpush.xpose.msra.mxu0 0.0
        %819 = vmatpush.xpose.msra.mxu0 0.0
        %820 = vmatpush.xpose.msra.mxu0 0.0
        %821 = vmatpush.xpose.msra.mxu0 0.0
        %822 = vmatpush.xpose.msra.mxu0 0.0
        %823 = vmatpush.xpose.msra.mxu0 0.0
        %824 = vmatpush.xpose.msra.mxu0 0.0
        %825 = vmatpush.xpose.msra.mxu0 0.0
        %826 = vmatpush.xpose.msra.mxu0 %v809
        %827 = vmatmul.f32.gmra.mxu0 %v807
        %v828 = vpop.f32.mrf.mxu0
        %v829 = vadd.f32 %v513, %v828
        %830 = vdwg.mxu0
        %v831 = vsel %vm541, %v829, -inf
        %832 = vmax.xlane.f32.xlu0 %v831
        %v833 = vpop.xlane.xlu0 %832
        %v834 = vsub.f32 %v829, %v833
        %v835 = vmul.f32 %v834, 1.442695
        %v836 = vpow.pop %v835
        %v837 = vsel %vm541, %v836, 0.0
        %838 = vadd.xlane.f32.xlu0 %v837
        %v839 = vpop.xlane.xlu0 %838
        %v840 = vrcp.pop %v839
        %v841 = vmul.f32 %v836, %v840
        %842 = vrot.lane.b32.xlu0 %v536, 40
        %v843 = vpop.permute.xlu0 %842
        %v846 = vsel %vm541, %v841, 0
        %848 = vmatpush.msra.mxu0 0.0
        %849 = vmatpush.msra.mxu0 0.0
        %850 = vmatpush.msra.mxu0 0.0
        %851 = vmatpush.msra.mxu0 0.0
        %852 = vmatpush.msra.mxu0 0.0
        %853 = vmatpush.msra.mxu0 0.0
        %854 = vmatpush.msra.mxu0 0.0
        %855 = vmatpush.msra.mxu0 0.0
        %856 = vmatpush.msra.mxu0 0.0
        %857 = vmatpush.msra.mxu0 0.0
        %858 = vmatpush.msra.mxu0 0.0
        %859 = vmatpush.msra.mxu0 0.0
        %860 = vmatpush.msra.mxu0 0.0
        %861 = vmatpush.msra.mxu0 0.0
        %862 = vmatpush.msra.mxu0 0.0
        %863 = vmatpush.msra.mxu0 %v843
        %864 = vmatmul.f32.gmra.mxu0 %v846
        %v865 = vpop.f32.mrf.mxu0
        %v866 = vadd.f32 0.0, %v865
        %867 = vdwg.mxu0
        %v869 = vsel %vm541, %v866, 0
        %871 = vmatpush.msra.mxu0 0.0
        %872 = vmatpush.msra.mxu0 0.0
        %873 = vmatpush.msra.mxu0 0.0
        %874 = vmatpush.msra.mxu0 0.0
        %875 = vmatpush.msra.mxu0 0.0
        %876 = vmatpush.msra.mxu0 0.0
        %877 = vmatpush.msra.mxu0 0.0
        %878 = vmatpush.msra.mxu0 0.0
        %879 = vmatpush.msra.mxu0 0.0
        %880 = vmatpush.msra.mxu0 0.0
        %881 = vmatpush.msra.mxu0 0.0
        %882 = vmatpush.msra.mxu0 0.0
        %883 = vmatpush.msra.mxu0 0.0
        %884 = vmatpush.msra.mxu0 0.0
        %885 = vmatpush.msra.mxu0 0.0
        %886 = vmatpush.msra.mxu0 %v511
        %887 = vmatmul.f32.gmra.mxu0 %v869
        %v888 = vpop.f32.mrf.mxu0
        %v889 = vadd.f32 0.0, %v888
        %890 = vdwg.mxu0
        %v891 = vadd.f32 %v802, %v889
        %v892 = vperm.slane %v512, 6
        %v893 = vadd.f32 %v891, %v892
        %v894 = vadd.f32 %v893, %v502
        %v895 = vsel %vm514, %v894, 0.0
        %896 = vadd.xlane.f32.xlu0 %v895
        %v897 = vpop.xlane.xlu0 %896
        %v898 = vrcp.pop 32.0
        %v899 = vmul.f32 32.0, %v898
        %v900 = vsub.f32 1.0, %v899
        %v901 = vmul.f32 %v898, %v900
        %v902 = vadd.f32 %v898, %v901
        %vm903 = vweird.f32 %v898
        %v904 = vsel %vm903, %v898, %v902
        %v905 = vmul.f32 %v897, %v904
        %v906 = vsub.f32 %v894, %v905
        %v907 = vmul.f32 %v906, %v906
        %v908 = vsel %vm514, %v907, 0.0
        %909 = vadd.xlane.f32.xlu0 %v908
        %v910 = vpop.xlane.xlu0 %909
        %v911 = vmul.f32 %v910, %v904
        %v912 = vadd.f32 %v911, 1e-05
        %v913 = vrsqrt.pop %v912
        %v914 = vmul.f32 %v913, %v912
        %v915 = vmul.f32 %v914, %v913
        %v916 = vmul.f32 0.5, %v915
        %v917 = vsub.f32 1.5, %v916
        %v918 = vmul.f32 %v913, %v917
        %vm919 = vweird.f32 %v912
        %vm920 = vweird.f32 %v913
        %vm921 = vmor %vm919, %vm920
        %v922 = vsel %vm921, %v913, %v918
        %v923 = vmul.f32 %v906, %v922
        %v924 = vperm.slane %v512, 0
        %v925 = vmul.f32 %v923, %v924
        %v926 = vperm.slane %v512, 1
        %v927 = vadd.f32 %v925, %v926
        %v928 = vld [vmem:[%s3] sm:$0xff]
        %v930 = vsel %vm514, %v927, 0
        %932 = vmatpush.msra.mxu0 0.0
        %933 = vmatpush.msra.mxu0 0.0
        %934 = vmatpush.msra.mxu0 0.0
        %935 = vmatpush.msra.mxu0 0.0
        %936 = vmatpush.msra.mxu0 0.0
        %937 = vmatpush.msra.mxu0 0.0
        %938 = vmatpush.msra.mxu0 0.0
        %939 = vmatpush.msra.mxu0 0.0
        %940 = vmatpush.msra.mxu0 0.0
        %941 = vmatpush.msra.mxu0 0.0
        %942 = vmatpush.msra.mxu0 0.0
        %943 = vmatpush.msra.mxu0 0.0
        %944 = vmatpush.msra.mxu0 %v507
        %945 = vmatpush.msra.mxu0 %v506
        %946 = vmatpush.msra.mxu0 %v505
        %947 = vmatpush.msra.mxu0 %v504
        %948 = vmatmul.f32.gmra.mxu0 %v930
        %v949 = vpop.f32.mrf.mxu0
        %v950 = vadd.f32 0.0, %v949
        %951 = vdwg.mxu0
        %956 = vrot.lane.b32.xlu0 %v504, 96
        %v957 = vpop.permute.xlu0 %956
        %958 = vrot.lane.b32.xlu0 %v505, 96
        %v959 = vpop.permute.xlu0 %958
        %960 = vrot.lane.b32.xlu0 %v506, 96
        %v961 = vpop.permute.xlu0 %960
        %962 = vrot.lane.b32.xlu0 %v507, 96
        %v963 = vpop.permute.xlu0 %962
        %v969 = vsel %vm514, %v503, 0
        %971 = vmatpush.msra.mxu0 0.0
        %972 = vmatpush.msra.mxu0 0.0
        %973 = vmatpush.msra.mxu0 0.0
        %974 = vmatpush.msra.mxu0 0.0
        %975 = vmatpush.msra.mxu0 0.0
        %976 = vmatpush.msra.mxu0 0.0
        %977 = vmatpush.msra.mxu0 0.0
        %978 = vmatpush.msra.mxu0 0.0
        %979 = vmatpush.msra.mxu0 0.0
        %980 = vmatpush.msra.mxu0 0.0
        %981 = vmatpush.msra.mxu0 0.0
        %982 = vmatpush.msra.mxu0 0.0
        %983 = vmatpush.msra.mxu0 %v963
        %984 = vmatpush.msra.mxu0 %v961
        %985 = vmatpush.msra.mxu0 %v959
        %986 = vmatpush.msra.mxu0 %v957
        %987 = vmatmul.f32.gmra.mxu0 %v969
        %v988 = vpop.f32.mrf.mxu0
        %v989 = vadd.f32 0.0, %v988
        %990 = vdwg.mxu0
        %v992 = vsel %vm541, %v950, 0
        %v995 = vsel %vm541, %v989, 0
        %997 = vmatpush.xpose.msra.mxu0 0.0
        %998 = vmatpush.xpose.msra.mxu0 0.0
        %999 = vmatpush.xpose.msra.mxu0 0.0
        %1000 = vmatpush.xpose.msra.mxu0 0.0
        %1001 = vmatpush.xpose.msra.mxu0 0.0
        %1002 = vmatpush.xpose.msra.mxu0 0.0
        %1003 = vmatpush.xpose.msra.mxu0 0.0
        %1004 = vmatpush.xpose.msra.mxu0 0.0
        %1005 = vmatpush.xpose.msra.mxu0 0.0
        %1006 = vmatpush.xpose.msra.mxu0 0.0
        %1007 = vmatpush.xpose.msra.mxu0 0.0
        %1008 = vmatpush.xpose.msra.mxu0 0.0
        %1009 = vmatpush.xpose.msra.mxu0 0.0
        %1010 = vmatpush.xpose.msra.mxu0 0.0
        %1011 = vmatpush.xpose.msra.mxu0 0.0
        %1012 = vmatpush.xpose.msra.mxu0 %v995
        %1013 = vmatmul.f32.gmra.mxu0 %v992
        %v1014 = vpop.f32.mrf.mxu0
        %v1015 = vadd.f32 %v928, %v1014
        %1016 = vdwg.mxu0
        %v1017 = vsel %vm541, %v1015, -inf
        %1018 = vmax.xlane.f32.xlu0 %v1017
        %v1019 = vpop.xlane.xlu0 %1018
        %v1020 = vsub.f32 %v1015, %v1019
        %v1021 = vmul.f32 %v1020, 1.442695
        %v1022 = vpow.pop %v1021
        %v1023 = vsel %vm541, %v1022, 0.0
        %1024 = vadd.xlane.f32.xlu0 %v1023
        %v1025 = vpop.xlane.xlu0 %1024
        %v1026 = vrcp.pop %v1025
        %v1027 = vmul.f32 %v1022, %v1026
        %1028 = vrot.lane.b32.xlu0 %v989, 96
        %v1029 = vpop.permute.xlu0 %1028
        %v1032 = vsel %vm541, %v1027, 0
        %1034 = vmatpush.msra.mxu0 0.0
        %1035 = vmatpush.msra.mxu0 0.0
        %1036 = vmatpush.msra.mxu0 0.0
        %1037 = vmatpush.msra.mxu0 0.0
        %1038 = vmatpush.msra.mxu0 0.0
        %1039 = vmatpush.msra.mxu0 0.0
        %1040 = vmatpush.msra.mxu0 0.0
        %1041 = vmatpush.msra.mxu0 0.0
        %1042 = vmatpush.msra.mxu0 0.0
        %1043 = vmatpush.msra.mxu0 0.0
        %1044 = vmatpush.msra.mxu0 0.0
        %1045 = vmatpush.msra.mxu0 0.0
        %1046 = vmatpush.msra.mxu0 0.0
        %1047 = vmatpush.msra.mxu0 0.0
        %1048 = vmatpush.msra.mxu0 0.0
        %1049 = vmatpush.msra.mxu0 %v1029
        %1050 = vmatmul.f32.gmra.mxu0 %v1032
        %v1051 = vpop.f32.mrf.mxu0
        %v1052 = vadd.f32 0.0, %v1051
        %1053 = vdwg.mxu0
        %1054 = vrot.lane.b32.xlu0 %v950, 120
        %v1055 = vpop.permute.xlu0 %1054
        %1056 = vrot.lane.b32.xlu0 %v989, 120
        %v1057 = vpop.permute.xlu0 %1056
        %v1058 = vsel %vm541, %v1055, 0
        %v1060 = vsel %vm541, %v1057, 0
        %1062 = vmatpush.xpose.msra.mxu0 0.0
        %1063 = vmatpush.xpose.msra.mxu0 0.0
        %1064 = vmatpush.xpose.msra.mxu0 0.0
        %1065 = vmatpush.xpose.msra.mxu0 0.0
        %1066 = vmatpush.xpose.msra.mxu0 0.0
        %1067 = vmatpush.xpose.msra.mxu0 0.0
        %1068 = vmatpush.xpose.msra.mxu0 0.0
        %1069 = vmatpush.xpose.msra.mxu0 0.0
        %1070 = vmatpush.xpose.msra.mxu0 0.0
        %1071 = vmatpush.xpose.msra.mxu0 0.0
        %1072 = vmatpush.xpose.msra.mxu0 0.0
        %1073 = vmatpush.xpose.msra.mxu0 0.0
        %1074 = vmatpush.xpose.msra.mxu0 0.0
        %1075 = vmatpush.xpose.msra.mxu0 0.0
        %1076 = vmatpush.xpose.msra.mxu0 0.0
        %1077 = vmatpush.xpose.msra.mxu0 %v1060
        %1078 = vmatmul.f32.gmra.mxu0 %v1058
        %v1079 = vpop.f32.mrf.mxu0
        %v1080 = vadd.f32 %v928, %v1079
        %1081 = vdwg.mxu0
        %v1082 = vsel %vm541, %v1080, -inf
        %1083 = vmax.xlane.f32.xlu0 %v1082
        %v1084 = vpop.xlane.xlu0 %1083
        %v1085 = vsub.f32 %v1080, %v1084
        %v1086 = vmul.f32 %v1085, 1.442695
        %v1087 = vpow.pop %v1086
        %v1088 = vsel %vm541, %v1087, 0.0
        %1089 = vadd.xlane.f32.xlu0 %v1088
        %v1090 = vpop.xlane.xlu0 %1089
        %v1091 = vrcp.pop %v1090
        %v1092 = vmul.f32 %v1087, %v1091
        %1093 = vrot.lane.b32.xlu0 %v989, 88
        %v1094 = vpop.permute.xlu0 %1093
        %v1097 = vsel %vm541, %v1092, 0
        %1099 = vmatpush.msra.mxu0 0.0
        %1100 = vmatpush.msra.mxu0 0.0
        %1101 = vmatpush.msra.mxu0 0.0
        %1102 = vmatpush.msra.mxu0 0.0
        %1103 = vmatpush.msra.mxu0 0.0
        %1104 = vmatpush.msra.mxu0 0.0
        %1105 = vmatpush.msra.mxu0 0.0
        %1106 = vmatpush.msra.mxu0 0.0
        %1107 = vmatpush.msra.mxu0 0.0
        %1108 = vmatpush.msra.mxu0 0.0
        %1109 = vmatpush.msra.mxu0 0.0
        %1110 = vmatpush.msra.mxu0 0.0
        %1111 = vmatpush.msra.mxu0 0.0
        %1112 = vmatpush.msra.mxu0 0.0
        %1113 = vmatpush.msra.mxu0 0.0
        %1114 = vmatpush.msra.mxu0 %v1094
        %1115 = vmatmul.f32.gmra.mxu0 %v1097
        %v1116 = vpop.f32.mrf.mxu0
        %v1117 = vadd.f32 0.0, %v1116
        %1118 = vdwg.mxu0
        %v1120 = vsel %vm541, %v1117, 0
        %1122 = vmatpush.msra.mxu0 0.0
        %1123 = vmatpush.msra.mxu0 0.0
        %1124 = vmatpush.msra.mxu0 0.0
        %1125 = vmatpush.msra.mxu0 0.0
        %1126 = vmatpush.msra.mxu0 0.0
        %1127 = vmatpush.msra.mxu0 0.0
        %1128 = vmatpush.msra.mxu0 0.0
        %1129 = vmatpush.msra.mxu0 0.0
        %1130 = vmatpush.msra.mxu0 0.0
        %1131 = vmatpush.msra.mxu0 0.0
        %1132 = vmatpush.msra.mxu0 0.0
        %1133 = vmatpush.msra.mxu0 0.0
        %1134 = vmatpush.msra.mxu0 0.0
        %1135 = vmatpush.msra.mxu0 0.0
        %1136 = vmatpush.msra.mxu0 0.0
        %1137 = vmatpush.msra.mxu0 %v509
        %1138 = vmatmul.f32.gmra.mxu0 %v1120
        %v1139 = vpop.f32.mrf.mxu0
        %v1140 = vadd.f32 0.0, %v1139
        %1141 = vdwg.mxu0
        %v1143 = vsel %vm541, %v1052, 0
        %1145 = vmatpush.msra.mxu0 0.0
        %1146 = vmatpush.msra.mxu0 0.0
        %1147 = vmatpush.msra.mxu0 0.0
        %1148 = vmatpush.msra.mxu0 0.0
        %1149 = vmatpush.msra.mxu0 0.0
        %1150 = vmatpush.msra.mxu0 0.0
        %1151 = vmatpush.msra.mxu0 0.0
        %1152 = vmatpush.msra.mxu0 0.0
        %1153 = vmatpush.msra.mxu0 0.0
        %1154 = vmatpush.msra.mxu0 0.0
        %1155 = vmatpush.msra.mxu0 0.0
        %1156 = vmatpush.msra.mxu0 0.0
        %1157 = vmatpush.msra.mxu0 0.0
        %1158 = vmatpush.msra.mxu0 0.0
        %1159 = vmatpush.msra.mxu0 0.0
        %1160 = vmatpush.msra.mxu0 %v508
        %1161 = vmatmul.f32.gmra.mxu0 %v1143
        %v1162 = vpop.f32.mrf.mxu0
        %v1163 = vadd.f32 %v1140, %v1162
        %1164 = vdwg.mxu0
        %1165 = vrot.lane.b32.xlu0 %v950, 112
        %v1166 = vpop.permute.xlu0 %1165
        %1167 = vrot.lane.b32.xlu0 %v989, 112
        %v1168 = vpop.permute.xlu0 %1167
        %v1169 = vsel %vm541, %v1166, 0
        %v1171 = vsel %vm541, %v1168, 0
        %1173 = vmatpush.xpose.msra.mxu0 0.0
        %1174 = vmatpush.xpose.msra.mxu0 0.0
        %1175 = vmatpush.xpose.msra.mxu0 0.0
        %1176 = vmatpush.xpose.msra.mxu0 0.0
        %1177 = vmatpush.xpose.msra.mxu0 0.0
        %1178 = vmatpush.xpose.msra.mxu0 0.0
        %1179 = vmatpush.xpose.msra.mxu0 0.0
        %1180 = vmatpush.xpose.msra.mxu0 0.0
        %1181 = vmatpush.xpose.msra.mxu0 0.0
        %1182 = vmatpush.xpose.msra.mxu0 0.0
        %1183 = vmatpush.xpose.msra.mxu0 0.0
        %1184 = vmatpush.xpose.msra.mxu0 0.0
        %1185 = vmatpush.xpose.msra.mxu0 0.0
        %1186 = vmatpush.xpose.msra.mxu0 0.0
        %1187 = vmatpush.xpose.msra.mxu0 0.0
        %1188 = vmatpush.xpose.msra.mxu0 %v1171
        %1189 = vmatmul.f32.gmra.mxu0 %v1169
        %v1190 = vpop.f32.mrf.mxu0
        %v1191 = vadd.f32 %v928, %v1190
        %1192 = vdwg.mxu0
        %v1193 = vsel %vm541, %v1191, -inf
        %1194 = vmax.xlane.f32.xlu0 %v1193
        %v1195 = vpop.xlane.xlu0 %1194
        %v1196 = vsub.f32 %v1191, %v1195
        %v1197 = vmul.f32 %v1196, 1.442695
        %v1198 = vpow.pop %v1197
        %v1199 = vsel %vm541, %v1198, 0.0
        %1200 = vadd.xlane.f32.xlu0 %v1199
        %v1201 = vpop.xlane.xlu0 %1200
        %v1202 = vrcp.pop %v1201
        %v1203 = vmul.f32 %v1198, %v1202
        %1204 = vrot.lane.b32.xlu0 %v989, 80
        %v1205 = vpop.permute.xlu0 %1204
        %v1208 = vsel %vm541, %v1203, 0
        %1210 = vmatpush.msra.mxu0 0.0
        %1211 = vmatpush.msra.mxu0 0.0
        %1212 = vmatpush.msra.mxu0 0.0
        %1213 = vmatpush.msra.mxu0 0.0
        %1214 = vmatpush.msra.mxu0 0.0
        %1215 = vmatpush.msra.mxu0 0.0
        %1216 = vmatpush.msra.mxu0 0.0
        %1217 = vmatpush.msra.mxu0 0.0
        %1218 = vmatpush.msra.mxu0 0.0
        %1219 = vmatpush.msra.mxu0 0.0
        %1220 = vmatpush.msra.mxu0 0.0
        %1221 = vmatpush.msra.mxu0 0.0
        %1222 = vmatpush.msra.mxu0 0.0
        %1223 = vmatpush.msra.mxu0 0.0
        %1224 = vmatpush.msra.mxu0 0.0
        %1225 = vmatpush.msra.mxu0 %v1205
        %1226 = vmatmul.f32.gmra.mxu0 %v1208
        %v1227 = vpop.f32.mrf.mxu0
        %v1228 = vadd.f32 0.0, %v1227
        %1229 = vdwg.mxu0
        %v1231 = vsel %vm541, %v1228, 0
        %1233 = vmatpush.msra.mxu0 0.0
        %1234 = vmatpush.msra.mxu0 0.0
        %1235 = vmatpush.msra.mxu0 0.0
        %1236 = vmatpush.msra.mxu0 0.0
        %1237 = vmatpush.msra.mxu0 0.0
        %1238 = vmatpush.msra.mxu0 0.0
        %1239 = vmatpush.msra.mxu0 0.0
        %1240 = vmatpush.msra.mxu0 0.0
        %1241 = vmatpush.msra.mxu0 0.0
        %1242 = vmatpush.msra.mxu0 0.0
        %1243 = vmatpush.msra.mxu0 0.0
        %1244 = vmatpush.msra.mxu0 0.0
        %1245 = vmatpush.msra.mxu0 0.0
        %1246 = vmatpush.msra.mxu0 0.0
        %1247 = vmatpush.msra.mxu0 0.0
        %1248 = vmatpush.msra.mxu0 %v510
        %1249 = vmatmul.f32.gmra.mxu0 %v1231
        %v1250 = vpop.f32.mrf.mxu0
        %v1251 = vadd.f32 0.0, %v1250
        %1252 = vdwg.mxu0
        %v1253 = vadd.f32 %v1163, %v1251
        %1254 = vrot.lane.b32.xlu0 %v950, 104
        %v1255 = vpop.permute.xlu0 %1254
        %1256 = vrot.lane.b32.xlu0 %v989, 104
        %v1257 = vpop.permute.xlu0 %1256
        %v1258 = vsel %vm541, %v1255, 0
        %v1260 = vsel %vm541, %v1257, 0
        %1262 = vmatpush.xpose.msra.mxu0 0.0
        %1263 = vmatpush.xpose.msra.mxu0 0.0
        %1264 = vmatpush.xpose.msra.mxu0 0.0
        %1265 = vmatpush.xpose.msra.mxu0 0.0
        %1266 = vmatpush.xpose.msra.mxu0 0.0
        %1267 = vmatpush.xpose.msra.mxu0 0.0
        %1268 = vmatpush.xpose.msra.mxu0 0.0
        %1269 = vmatpush.xpose.msra.mxu0 0.0
        %1270 = vmatpush.xpose.msra.mxu0 0.0
        %1271 = vmatpush.xpose.msra.mxu0 0.0
        %1272 = vmatpush.xpose.msra.mxu0 0.0
        %1273 = vmatpush.xpose.msra.mxu0 0.0
        %1274 = vmatpush.xpose.msra.mxu0 0.0
        %1275 = vmatpush.xpose.msra.mxu0 0.0
        %1276 = vmatpush.xpose.msra.mxu0 0.0
        %1277 = vmatpush.xpose.msra.mxu0 %v1260
        %1278 = vmatmul.f32.gmra.mxu0 %v1258
        %v1279 = vpop.f32.mrf.mxu0
        %v1280 = vadd.f32 %v928, %v1279
        %1281 = vdwg.mxu0
        %v1282 = vsel %vm541, %v1280, -inf
        %1283 = vmax.xlane.f32.xlu0 %v1282
        %v1284 = vpop.xlane.xlu0 %1283
        %v1285 = vsub.f32 %v1280, %v1284
        %v1286 = vmul.f32 %v1285, 1.442695
        %v1287 = vpow.pop %v1286
        %v1288 = vsel %vm541, %v1287, 0.0
        %1289 = vadd.xlane.f32.xlu0 %v1288
        %v1290 = vpop.xlane.xlu0 %1289
        %v1291 = vrcp.pop %v1290
        %v1292 = vmul.f32 %v1287, %v1291
        %1293 = vrot.lane.b32.xlu0 %v989, 72
        %v1294 = vpop.permute.xlu0 %1293
        %v1297 = vsel %vm541, %v1292, 0
        %1299 = vmatpush.msra.mxu0 0.0
        %1300 = vmatpush.msra.mxu0 0.0
        %1301 = vmatpush.msra.mxu0 0.0
        %1302 = vmatpush.msra.mxu0 0.0
        %1303 = vmatpush.msra.mxu0 0.0
        %1304 = vmatpush.msra.mxu0 0.0
        %1305 = vmatpush.msra.mxu0 0.0
        %1306 = vmatpush.msra.mxu0 0.0
        %1307 = vmatpush.msra.mxu0 0.0
        %1308 = vmatpush.msra.mxu0 0.0
        %1309 = vmatpush.msra.mxu0 0.0
        %1310 = vmatpush.msra.mxu0 0.0
        %1311 = vmatpush.msra.mxu0 0.0
        %1312 = vmatpush.msra.mxu0 0.0
        %1313 = vmatpush.msra.mxu0 0.0
        %1314 = vmatpush.msra.mxu0 %v1294
        %1315 = vmatmul.f32.gmra.mxu0 %v1297
        %v1316 = vpop.f32.mrf.mxu0
        %v1317 = vadd.f32 0.0, %v1316
        %1318 = vdwg.mxu0
        %v1320 = vsel %vm541, %v1317, 0
        %1322 = vmatpush.msra.mxu0 0.0
        %1323 = vmatpush.msra.mxu0 0.0
        %1324 = vmatpush.msra.mxu0 0.0
        %1325 = vmatpush.msra.mxu0 0.0
        %1326 = vmatpush.msra.mxu0 0.0
        %1327 = vmatpush.msra.mxu0 0.0
        %1328 = vmatpush.msra.mxu0 0.0
        %1329 = vmatpush.msra.mxu0 0.0
        %1330 = vmatpush.msra.mxu0 0.0
        %1331 = vmatpush.msra.mxu0 0.0
        %1332 = vmatpush.msra.mxu0 0.0
        %1333 = vmatpush.msra.mxu0 0.0
        %1334 = vmatpush.msra.mxu0 0.0
        %1335 = vmatpush.msra.mxu0 0.0
        %1336 = vmatpush.msra.mxu0 0.0
        %1337 = vmatpush.msra.mxu0 %v511
        %1338 = vmatmul.f32.gmra.mxu0 %v1320
        %v1339 = vpop.f32.mrf.mxu0
        %v1340 = vadd.f32 0.0, %v1339
        %1341 = vdwg.mxu0
        %v1342 = vadd.f32 %v1253, %v1340
        %v1343 = vadd.f32 %v1342, %v892
        %v1344 = vadd.f32 %v927, %v1343
        %v1345 = vsel %vm514, %v1344, 0.0
        %1346 = vadd.xlane.f32.xlu0 %v1345
        %v1347 = vpop.xlane.xlu0 %1346
        %v1348 = vmul.f32 %v1347, %v904
        %v1349 = vsub.f32 %v1344, %v1348
        %v1350 = vmul.f32 %v1349, %v1349
        %v1351 = vsel %vm514, %v1350, 0.0
        %1352 = vadd.xlane.f32.xlu0 %v1351
        %v1353 = vpop.xlane.xlu0 %1352
        %v1354 = vmul.f32 %v1353, %v904
        %v1355 = vadd.f32 %v1354, 1e-05
        %v1356 = vrsqrt.pop %v1355
        %v1357 = vmul.f32 %v1356, %v1355
        %v1358 = vmul.f32 %v1357, %v1356
        %v1359 = vmul.f32 0.5, %v1358
        %v1360 = vsub.f32 1.5, %v1359
        %v1361 = vmul.f32 %v1356, %v1360
        %vm1362 = vweird.f32 %v1355
        %vm1363 = vweird.f32 %v1356
        %vm1364 = vmor %vm1362, %vm1363
        %v1365 = vsel %vm1364, %v1356, %v1361
        %v1366 = vmul.f32 %v1349, %v1365
        %v1367 = vperm.slane %v512, 2
        %v1368 = vmul.f32 %v1366, %v1367
        %v1369 = vperm.slane %v512, 3
        %v1370 = vadd.f32 %v1368, %v1369
        %v1371 = vld [vmem:[%s482] sm:$0xff]
        %v1372 = vld [vmem:[%s482 + $0x8] sm:$0xff]
        %v1373 = vld [vmem:[%s482 + $0x10] sm:$0xff]
        %v1374 = vld [vmem:[%s482 + $0x18] sm:$0xff]
        %v1375 = vld [vmem:[%s485] sm:$0x1]
        %v1377 = vperm.slane %v1375, 0
        %v1380 = vsel %vm514, %v1370, 0
        %1382 = vmatpush.msra.mxu0 0.0
        %1383 = vmatpush.msra.mxu0 0.0
        %1384 = vmatpush.msra.mxu0 0.0
        %1385 = vmatpush.msra.mxu0 0.0
        %1386 = vmatpush.msra.mxu0 0.0
        %1387 = vmatpush.msra.mxu0 0.0
        %1388 = vmatpush.msra.mxu0 0.0
        %1389 = vmatpush.msra.mxu0 0.0
        %1390 = vmatpush.msra.mxu0 0.0
        %1391 = vmatpush.msra.mxu0 0.0
        %1392 = vmatpush.msra.mxu0 0.0
        %1393 = vmatpush.msra.mxu0 0.0
        %1394 = vmatpush.msra.mxu0 %v1374
        %1395 = vmatpush.msra.mxu0 %v1373
        %1396 = vmatpush.msra.mxu0 %v1372
        %1397 = vmatpush.msra.mxu0 %v1371
        %1398 = vmatmul.f32.gmra.mxu0 %v1380
        %v1399 = vpop.f32.mrf.mxu0
        %v1400 = vadd.f32 %v1377, %v1399
        %1401 = vdwg.mxu0
        %v1402 = vmax.f32 %v1400, 0.0
        %v1403 = vld [vmem:[%s490] sm:$0xff]
        %v1404 = vld [vmem:[%s490 + $0x8] sm:$0xff]
        %v1405 = vld [vmem:[%s490 + $0x10] sm:$0xff]
        %v1406 = vld [vmem:[%s490 + $0x18] sm:$0xff]
        %v1407 = vld [vmem:[%s490 + $0x20] sm:$0xff]
        %v1408 = vld [vmem:[%s490 + $0x28] sm:$0xff]
        %v1409 = vld [vmem:[%s490 + $0x30] sm:$0xff]
        %v1410 = vld [vmem:[%s490 + $0x38] sm:$0xff]
        %v1411 = vld [vmem:[%s490 + $0x40] sm:$0xff]
        %v1412 = vld [vmem:[%s490 + $0x48] sm:$0xff]
        %v1413 = vld [vmem:[%s490 + $0x50] sm:$0xff]
        %v1414 = vld [vmem:[%s490 + $0x58] sm:$0xff]
        %v1415 = vld [vmem:[%s490 + $0x60] sm:$0xff]
        %v1416 = vld [vmem:[%s490 + $0x68] sm:$0xff]
        %v1417 = vld [vmem:[%s490 + $0x70] sm:$0xff]
        %v1418 = vld [vmem:[%s490 + $0x78] sm:$0xff]
        %v1419 = vperm.slane %v512, 7
        %1420 = vmatpush.msra.mxu0 %v1418
        %1421 = vmatpush.msra.mxu0 %v1417
        %1422 = vmatpush.msra.mxu0 %v1416
        %1423 = vmatpush.msra.mxu0 %v1415
        %1424 = vmatpush.msra.mxu0 %v1414
        %1425 = vmatpush.msra.mxu0 %v1413
        %1426 = vmatpush.msra.mxu0 %v1412
        %1427 = vmatpush.msra.mxu0 %v1411
        %1428 = vmatpush.msra.mxu0 %v1410
        %1429 = vmatpush.msra.mxu0 %v1409
        %1430 = vmatpush.msra.mxu0 %v1408
        %1431 = vmatpush.msra.mxu0 %v1407
        %1432 = vmatpush.msra.mxu0 %v1406
        %1433 = vmatpush.msra.mxu0 %v1405
        %1434 = vmatpush.msra.mxu0 %v1404
        %1435 = vmatpush.msra.mxu0 %v1403
        %1436 = vmatmul.f32.gmra.mxu0 %v1402
        %v1437 = vpop.f32.mrf.mxu0
        %v1438 = vadd.f32 %v1419, %v1437
        %1439 = vdwg.mxu0
        %v1440 = vadd.f32 %v1370, %v1438
        %v1441 = vsel %vm514, %v1440, 0.0
        %1442 = vadd.xlane.f32.xlu0 %v1441
        %v1443 = vpop.xlane.xlu0 %1442
        %v1444 = vmul.f32 %v1443, %v904
        %v1445 = vsub.f32 %v1440, %v1444
        %v1446 = vmul.f32 %v1445, %v1445
        %v1447 = vsel %vm514, %v1446, 0.0
        %1448 = vadd.xlane.f32.xlu0 %v1447
        %v1449 = vpop.xlane.xlu0 %1448
        %v1450 = vmul.f32 %v1449, %v904
        %v1451 = vadd.f32 %v1450, 1e-05
        %v1452 = vrsqrt.pop %v1451
        %v1453 = vmul.f32 %v1452, %v1451
        %v1454 = vmul.f32 %v1453, %v1452
        %v1455 = vmul.f32 0.5, %v1454
        %v1456 = vsub.f32 1.5, %v1455
        %v1457 = vmul.f32 %v1452, %v1456
        %vm1458 = vweird.f32 %v1451
        %vm1459 = vweird.f32 %v1452
        %vm1460 = vmor %vm1458, %vm1459
        %v1461 = vsel %vm1460, %v1452, %v1457
        %v1462 = vmul.f32 %v1445, %v1461
        %v1463 = vperm.slane %v512, 4
        %v1464 = vmul.f32 %v1462, %v1463
        %v1465 = vperm.slane %v512, 5
        %v1466 = vadd.f32 %v1464, %v1465
        %1467 = vst.msk [vmem:[%s459] sm:$0xff] %vm514, %v1466
        %s1468 = sand.u32 %s294, 1
        %s1469 = scalar_lea.sflag [#allocation3], %s1468
        %s1470 = sand.u32 %s294, 1
        %s1471 = smul.addr %s1470, 8
        %s1472 = scalar_lea.vmem [#allocation2], %s1471
        // Predicated region
        $region65: #{decoder_forward.1} parent=59 // pred_check
          %p1473 = pneg %p304
        $region66: #{decoder_forward.1} parent=59 // pred_check_branch
          %1475 = sbr.rel (%p1473) target = $region68
        $region67: #{decoder_forward.1} parent=59 // pred_region
          %1477 = vsyncadd %s1469, 0
          %s1478 = smul.addr %s28, 8
          %s1479 = scalar_lea.hbm %s10, %s1478
          %s1481 = sshll.u32 %s1472, 4
          %s1482 = int_to_ptr.vmem [resolvable:$true] %s1481
          %s1483 = sshll.u32 %s1479, 4
          %s1484 = int_to_ptr.hbm [resolvable:$true] %s1483
          %1486 = dma.vmem_to_hbm [thread:$0]  %s1482, 128, %s1484, %s1469
        $region68: #{decoder_forward.1} parent=59 // pred_fallthru
          _
      $region60: #{decoder_forward.1} parent=5 // pred_fallthru
        _
      %p1487 = scmp.le.s32.totalorder 2, %s19
      // Predicated region
      $region69: #{decoder_forward.1} parent=5 // pred_check
        %p1488 = pneg %p1487
      $region70: #{decoder_forward.1} parent=5 // pred_check_branch
        %1490 = sbr.rel (%p1488) target = $region72
      $region71: #{decoder_forward.1} parent=5 // pred_region
        %s1491 = ssub.s32 %s19, 2
        // Predicated region
        $region73: #{decoder_forward.1} parent=71 // pred_check
          %p1492 = pneg %p310
        $region74: #{decoder_forward.1} parent=71 // pred_check_branch
          %1494 = sbr.rel (%p1492) target = $region76
        $region75: #{decoder_forward.1} parent=71 // pred_region
          %s1495 = sand.u32 %s295, 1
          %s1496 = scalar_lea.sflag [#allocation3], %s1495
          %s1497 = sand.u32 %s295, 1
          %s1498 = smul.addr %s1497, 8
          %s1499 = scalar_lea.vmem [#allocation2], %s1498
          %1501 = dma.done %s1496, 128
        $region76: #{decoder_forward.1} parent=71 // pred_fallthru
          _
      $region72: #{decoder_forward.1} parent=5 // pred_fallthru
        _
    $region6: #{decoder_forward.1} parent=1 // loop_footer
      %s23 = sadd.s32 1, %s19
    $region7: #{decoder_forward.1} parent=1 // loop_footer_branch
      %18 = sbr.rel target = $region3
    $region8: #{decoder_forward.1} parent=1 // loop_exit
      _
    %1502 = vsyncpa [#allocation3], 1
    %s1503 = scalar_lea.sflag [#allocation3], 1
    %1504 = vsyncpa %s1503, 1

</llo_original>
